<compile_context>
chip_gen: v7x
topology: tpu7x:2x2x1
jax: 0.10.0
libtpu: 0.0.40
codegen_flags: <defaults>
</compile_context>

<pallas_src>
import numpy as np
import jax
import jax.numpy as jnp
from jax.experimental import pallas as pl
from jax.experimental.pallas import tpu as pltpu


# ----------------------------------------------------------------------------
# Pallas kernel 1: M-tiled matmul + bias (input-to-state conv -> x-gates)
# ----------------------------------------------------------------------------
def _mm_bias_kernel(a_ref, w_ref, b_ref, o_ref):
    o_ref[...] = (
        jnp.dot(a_ref[...], w_ref[...], preferred_element_type=jnp.float32)
        + b_ref[...]
    )


def matmul_bias(a_bf16, w_bf16, b_f32):
    """(M,K)bf16 @ (K,N)bf16 + b, M-tiled grid (parallel -> DMA/compute overlap
    on every generation, shards across both TensorCores on v7x)."""
    M, K = a_bf16.shape
    K2, N = w_bf16.shape
    assert K == K2

    # >= 2 grid steps whenever M >= 16; never tm = M for large M.
    tm = 256
    while tm > 8 and tm * 2 > M:
        tm //= 2
    Mp = pl.cdiv(M, tm) * tm
    if Mp != M:
        a_bf16 = jnp.pad(a_bf16, ((0, Mp - M), (0, 0)))
    grid = (Mp // tm,)

    # Explicit VMEM budget: double-buffered tiles + resident weights/bias,
    # with headroom; capped below v7x's 64 MiB physical VMEM.
    need = 2 * (tm * K * 2 + tm * N * 4) + K * N * 2 + N * 4
    vmem_limit = int(min(64 * 2**20, max(32 * 2**20, 2 * need)))

    out = pl.pallas_call(
        _mm_bias_kernel,
        grid=grid,
        in_specs=[
            pl.BlockSpec((tm, K), lambda i: (i, 0)),
            pl.BlockSpec((K, N), lambda i: (0, 0)),
            pl.BlockSpec((1, N), lambda i: (0, 0)),
        ],
        out_specs=pl.BlockSpec((tm, N), lambda i: (i, 0)),
        out_shape=jax.ShapeDtypeStruct((Mp, N), jnp.float32),
        compiler_params=pltpu.CompilerParams(
            dimension_semantics=("parallel",),
            vmem_limit_bytes=vmem_limit,
        ),
    )(a_bf16, w_bf16, b_f32.reshape(1, N))
    return out[:M] if Mp != M else out


# ----------------------------------------------------------------------------
# Pallas kernel 2: fused RowLSTM recurrence (one call for all H rows)
# ----------------------------------------------------------------------------
def _row_lstm_kernel(xg_ref, wh_ref, post_ref, mask_ref, o_ref, h_scr, c_scr):
    step = pl.program_id(0)
    BW, F = h_scr.shape

    @pl.when(step == 0)
    def _():
        h_scr[...] = jnp.zeros_like(h_scr)
        c_scr[...] = jnp.zeros_like(c_scr)

    h = h_scr[...]                     # (BW, F) f32 carry, VMEM-resident
    c = c_scr[...]

    # (1,3) state-to-state conv taps along the flattened B*W axis.
    # Boundary rows zeroed with precomputed resident masks (no per-step iota).
    h_prev = pltpu.roll(h, shift=1, axis=0) * mask_ref[0]
    h_next = pltpu.roll(h, shift=BW - 1, axis=0) * mask_ref[1]

    # Gates = precomputed x-contribution + three accumulating MXU dots.
    # The 0.5 pre-scale for the sigmoid (i/f/o) columns is already folded
    # into xg and wh, so one full-width tanh serves all four gates.
    gates = (
        xg_ref[step]
        + jnp.dot(h_prev.astype(jnp.bfloat16), wh_ref[0],
                  preferred_element_type=jnp.float32)
        + jnp.dot(h.astype(jnp.bfloat16), wh_ref[1],
                  preferred_element_type=jnp.float32)
        + jnp.dot(h_next.astype(jnp.bfloat16), wh_ref[2],
                  preferred_element_type=jnp.float32)
    )                                  # (BW, 4F) f32

    t = jnp.tanh(gates)                                # one EUP pass, 128 lanes
    act = t * post_ref[0] + post_ref[1]                # sigmoid for i/f/o, tanh for g

    i_g = act[:, 0 * F:1 * F]          # PyTorch LSTM gate order i, f, g, o
    f_g = act[:, 1 * F:2 * F]
    g_g = act[:, 2 * F:3 * F]
    o_g = act[:, 3 * F:4 * F]

    c_new = f_g * c + i_g * g_g
    h_new = o_g * jnp.tanh(c_new)

    h_scr[...] = h_new
    c_scr[...] = c_new
    o_ref[step] = h_new                # resident output slab, one writeback at end


def row_lstm_recurrence(xg_steps, w_h, post, mask2):
    """xg_steps: (H, B*W, 4F) precomputed x-gates; returns h per row (H, B*W, F)."""
    H, BW, G = xg_steps.shape
    F = G // 4

    need = (2 * (H * BW * G * 4 + H * BW * F * 4)      # resident in/out (double-buffered)
            + 3 * F * G * 2 + 2 * BW * G * 4 + 2 * BW * F * 4   # weights + post + masks
            + 2 * BW * F * 4)                           # h/c scratch
    vmem_limit = int(min(64 * 2**20, max(32 * 2**20, 2 * need)))

    return pl.pallas_call(
        _row_lstm_kernel,
        grid=(H,),
        in_specs=[
            pl.BlockSpec((H, BW, G), lambda i: (0, 0, 0)),   # resident x-gates
            pl.BlockSpec((3, F, G), lambda i: (0, 0, 0)),    # resident split W_h
            pl.BlockSpec((2, BW, G), lambda i: (0, 0, 0)),   # resident post scale/bias
            pl.BlockSpec((2, BW, F), lambda i: (0, 0, 0)),   # resident boundary masks
        ],
        out_specs=pl.BlockSpec((H, BW, F), lambda i: (0, 0, 0)),  # resident output
        out_shape=jax.ShapeDtypeStruct((H, BW, F), jnp.float32),
        scratch_shapes=[
            pltpu.VMEM((BW, F), jnp.float32),   # h carry
            pltpu.VMEM((BW, F), jnp.float32),   # c carry
        ],
        compiler_params=pltpu.CompilerParams(
            dimension_semantics=("arbitrary",),
            vmem_limit_bytes=vmem_limit,
        ),
    )(xg_steps, w_h, post, mask2)


# ----------------------------------------------------------------------------
# Plain-JAX glue: mask, params, weight folding (f32), layout plumbing
# ----------------------------------------------------------------------------
def make_mask(out_c, in_c, kh, kw, dc, mask_type):
    yc, xc = kh // 2, kw // 2
    mask = np.zeros((out_c, in_c, kh, kw), dtype=np.float32)
    mask[:, :, :yc, :] = 1
    mask[:, :, yc, :xc + 1] = 1

    def cmask(o, i):
        a = (np.arange(out_c) % dc == o)[:, None]
        b = (np.arange(in_c) % dc == i)[None, :]
        return a * b

    for o in range(dc):
        for i in range(o + 1, dc):
            mask[cmask(o, i), yc, xc] = 0
    if mask_type == 'A':
        for c in range(dc):
            mask[cmask(c, c), yc, xc] = 0
    return jnp.asarray(mask)


def init_rowlstm(key, in_channels, out_channels, data_channels):
    F = out_channels
    ks = jax.random.split(key, 8)
    b1 = 1.0 / np.sqrt(in_channels * 3)     # (1,3) conv fan-in
    b2 = 1.0 / np.sqrt(F)                   # nn.LSTM init bound
    b3 = 1.0 / np.sqrt(F * 3)               # (1,3) s2s conv fan-in
    return {
        "i2s_w": jax.random.uniform(ks[0], (F, in_channels, 1, 3), jnp.float32, -b1, b1),
        "i2s_b": jax.random.uniform(ks[1], (F,), jnp.float32, -b1, b1),
        "mask": make_mask(F, in_channels, 1, 3, data_channels, 'B'),
        "w_ih": jax.random.uniform(ks[2], (4 * F, F), jnp.float32, -b2, b2),
        # w_hh is dead at runtime: the reference zeroes h before every LSTM call.
        "w_hh": jax.random.uniform(ks[3], (4 * F, F), jnp.float32, -b2, b2),
        "b_ih": jax.random.uniform(ks[4], (4 * F,), jnp.float32, -b2, b2),
        "b_hh": jax.random.uniform(ks[5], (4 * F,), jnp.float32, -b2, b2),
        "s2s_w": jax.random.uniform(ks[6], (F, F, 1, 3), jnp.float32, -b3, b3),
        "s2s_b": jax.random.uniform(ks[7], (F,), jnp.float32, -b3, b3),
    }


def _fold_params(params):
    """Fold conv + LSTM weights so that
         gates = cols @ W_x + bias_x  +  h_prev @ Wh0 + h @ Wh1 + h_next @ Wh2
       with the 0.5 sigmoid pre-scale already applied per gate column.
       All composition in f32; only the final MXU operands are cast to bf16."""
    F = params["i2s_b"].shape[0]
    Cin = params["i2s_w"].shape[1]

    w_ih = params["w_ih"]                                # (4F, F)
    wg = w_ih.T                                          # (F, 4F)

    # Per-gate-column scales (i, f, g, o): 0.5 for sigmoid gates, 1.0 for g.
    half = jnp.full((F,), 0.5, jnp.float32)
    one = jnp.ones((F,), jnp.float32)
    zero = jnp.zeros((F,), jnp.float32)
    col_scale = jnp.concatenate([half, half, one, half])          # pre/post scale
    post_bias = jnp.concatenate([half, half, zero, half])         # post bias

    wg_s = wg * col_scale[None, :]                       # (F, 4F), f32

    # Input-to-state (masked 1x3 conv) weights composed with W_ih^T.
    w_i2s = params["i2s_w"] * params["mask"]             # (F, Cin, 1, 3)
    wmat = w_i2s.transpose(2, 3, 1, 0).reshape(3 * Cin, F)        # (3Cin, F)
    w_x = wmat @ wg_s                                    # (3Cin, 4F), f32

    # Fused bias: (i2s_b + s2s_b) @ W_ih^T + b_ih + b_hh, then gate scaling.
    bias_x = ((params["i2s_b"] + params["s2s_b"]) @ wg
              + params["b_ih"] + params["b_hh"]) * col_scale       # (4F,), f32

    # State-to-state (1,3) conv taps composed with W_ih^T, split per tap.
    a0 = params["s2s_w"][:, :, 0, 0].T                   # h_{m-1} tap
    a1 = params["s2s_w"][:, :, 0, 1].T                   # h_m tap
    a2 = params["s2s_w"][:, :, 0, 2].T                   # h_{m+1} tap
    w_h = jnp.stack([a0 @ wg_s, a1 @ wg_s, a2 @ wg_s], axis=0)     # (3, F, 4F), f32

    return (w_x.astype(jnp.bfloat16), bias_x.astype(jnp.float32),
            w_h.astype(jnp.bfloat16), col_scale, post_bias)


def rowlstm_forward(params, x):
    B, Cin, H, W = x.shape
    F = params["i2s_b"].shape[0]
    BW = B * W

    w_x, bias_x, w_h, col_scale, post_bias = _fold_params(params)

    # ---- input-to-state masked (1,3) conv (+ folded W_ih) via im2col matmul ----
    # NOTE: im2col stays in XLA here (negligible at these sizes); for large
    # inputs do the 3-tap conv as shifted dot accumulations inside the kernel.
    xp = jnp.pad(x, ((0, 0), (0, 0), (0, 0), (1, 1)))
    cols = jnp.stack([xp[:, :, :, j:j + W] for j in range(3)], axis=1)  # (B,3,Cin,H,W)
    cols = cols.transpose(0, 3, 4, 1, 2).reshape(B * H * W, 3 * Cin)
    cols = cols.astype(jnp.bfloat16)
    x_gates = matmul_bias(cols, w_x, bias_x)              # (B*H*W, 4F) f32

    # per-row slabs, rows ordered (b, w) with w fastest (matches torch .view)
    xg_steps = (x_gates.reshape(B, H, W, 4 * F)
                .transpose(1, 0, 2, 3).reshape(H, BW, 4 * F))       # (H, B*W, 4F)

    # ---- resident per-column activation scale/bias and boundary masks ----
    post = jnp.stack([jnp.broadcast_to(col_scale[None, :], (BW, 4 * F)),
                      jnp.broadcast_to(post_bias[None, :], (BW, 4 * F))], axis=0)
    mask_prev = jnp.ones((BW, F), jnp.float32).at[0, :].set(0.0)
    mask_next = jnp.ones((BW, F), jnp.float32).at[BW - 1, :].set(0.0)
    mask2 = jnp.stack([mask_prev, mask_next], axis=0)

    # ---- fused recurrence: one pallas_call over all H rows ----
    ys = row_lstm_recurrence(xg_steps, w_h, post, mask2)   # (H, B*W, F)

    # torch: h.contiguous().view(B, F, 1, W), cat over dim=2 -> (B, F, H, W)
    return ys.reshape(H, B, F, W).transpose(1, 2, 0, 3)


# ----------------------------------------------------------------------------
# Pure-JAX reference (f32, no Pallas, no weight folding) for correctness
# ----------------------------------------------------------------------------
def rowlstm_reference(params, x):
    B, Cin, H, W = x.shape
    F = params["i2s_b"].shape[0]
    w = params["i2s_w"] * params["mask"]
    xs = jax.lax.conv_general_dilated(
        x, w, window_strides=(1, 1), padding=((0, 0), (1, 1)),
        dimension_numbers=('NCHW', 'OIHW', 'NCHW'))
    xs = xs + params["i2s_b"][None, :, None, None]

    w_ih = params["w_ih"]
    bias = params["b_ih"] + params["b_hh"]
    a0 = params["s2s_w"][:, :, 0, 0].T
    a1 = params["s2s_w"][:, :, 0, 1].T
    a2 = params["s2s_w"][:, :, 0, 2].T
    bss = params["s2s_b"]

    BW = B * W
    h = jnp.zeros((BW, F), jnp.float32)
    c = jnp.zeros((BW, F), jnp.float32)
    zero = jnp.zeros((1, F), jnp.float32)
    outs = []
    for i in range(H):
        x_row = xs[:, :, i, :].transpose(0, 2, 1).reshape(BW, F)
        h_prev = jnp.concatenate([zero, h[:-1]], axis=0)
        h_next = jnp.concatenate([h[1:], zero], axis=0)
        h_conv = h_prev @ a0 + h @ a1 + h_next @ a2 + bss[None, :]
        gates = (x_row + h_conv) @ w_ih.T + bias[None, :]
        i_g = jax.nn.sigmoid(gates[:, 0 * F:1 * F])
        f_g = jax.nn.sigmoid(gates[:, 1 * F:2 * F])
        g_g = jnp.tanh(gates[:, 2 * F:3 * F])
        o_g = jax.nn.sigmoid(gates[:, 3 * F:4 * F])
        c = f_g * c + i_g * g_g
        h = o_g * jnp.tanh(c)
        outs.append(h)
    ys = jnp.stack(outs, axis=0)
    return ys.reshape(H, B, F, W).transpose(1, 2, 0, 3)


# ----------------------------------------------------------------------------
# Main
# ----------------------------------------------------------------------------
if __name__ == "__main__":
    B = 2            # batch
    Cin = 16         # in_channels
    F = 32           # out_channels (hidden size) -> 4F = 128 lanes for gates
    DC = 4           # data_channels
    H = W = 16       # spatial

    key = jax.random.PRNGKey(0)
    pkey, xkey = jax.random.split(key)
    params = init_rowlstm(pkey, Cin, F, DC)
    x = jax.random.normal(xkey, (B, Cin, H, W), jnp.float32)

    fwd = jax.jit(rowlstm_forward)
    out = jax.block_until_ready(fwd(params, x))

    assert out.shape == (B, F, H, W), out.shape
    assert bool(jnp.all(jnp.isfinite(out)))

    # Check against the pure-JAX f32 reference (bf16 MXU operands -> loose tol).
    ref = jax.block_until_ready(jax.jit(rowlstm_reference)(params, x))
    max_err = float(jnp.max(jnp.abs(out - ref)))
    assert max_err < 5e-2, max_err

    print("KERNEL_OK")
</pallas_src>

<mosaic_0001>
module attributes {stable_mosaic.version = 11 : i64} {
  func.func @_mm_bias_kernel(%arg0: i32, %arg1: memref<256x48xbf16, #tpu.memory_space<vmem>>, %arg2: memref<48x128xbf16, #tpu.memory_space<vmem>>, %arg3: memref<1x128xf32, #tpu.memory_space<vmem>>, %arg4: memref<256x128xf32, #tpu.memory_space<vmem>>) attributes {dimension_semantics = [#tpu.dimension_semantics<parallel>], iteration_bounds = array<i64: 2>, scalar_prefetch = 0 : i64, scratch_operands = 0 : i64, tpu.core_type = #tpu.core_type<tc>, window_params = [{transform_indices = @transform_0, window_bounds = array<i64: 256, 48>}, {pipeline_mode = #tpu.pipeline_mode<synchronous>, transform_indices = @transform_1, window_bounds = array<i64: 48, 128>}, {pipeline_mode = #tpu.pipeline_mode<synchronous>, transform_indices = @transform_2, window_bounds = array<i64: 1, 128>}, {transform_indices = @transform_3, window_bounds = array<i64: 256, 128>}]} {
    %c0 = arith.constant 0 : index
    %c0_0 = arith.constant 0 : index
    %0 = vector.load %arg1[%c0, %c0_0] : memref<256x48xbf16, #tpu.memory_space<vmem>>, vector<256x48xbf16>
    %c0_1 = arith.constant 0 : index
    %c0_2 = arith.constant 0 : index
    %1 = vector.load %arg2[%c0_1, %c0_2] : memref<48x128xbf16, #tpu.memory_space<vmem>>, vector<48x128xbf16>
    %cst = arith.constant dense<0.000000e+00> : vector<256x128xf32>
    %2 = tpu.matmul %0, %1, %cst {dimension_numbers = #tpu.dot_dimension_numbers<[1], [0], [0], [1], [0, 0, 1, 1], [], []>} : vector<256x48xbf16>, vector<48x128xbf16>, vector<256x128xf32> -> vector<256x128xf32>
    %c0_3 = arith.constant 0 : index
    %c0_4 = arith.constant 0 : index
    %3 = vector.load %arg3[%c0_3, %c0_4] : memref<1x128xf32, #tpu.memory_space<vmem>>, vector<1x128xf32>
    %4 = vector.broadcast %3 : vector<1x128xf32> to vector<256x128xf32>
    %5 = arith.addf %2, %4 : vector<256x128xf32>
    %c0_5 = arith.constant 0 : index
    %c0_6 = arith.constant 0 : index
    %6 = vector.load %arg4[%c0_5, %c0_6] : memref<256x128xf32, #tpu.memory_space<vmem>>, vector<256x128xf32>
    tpu.vector_store %arg4[%c0_5, %c0_6], %5 {strides = array<i32>} : memref<256x128xf32, #tpu.memory_space<vmem>>, vector<256x128xf32>,
    return
  }
  func.func @transform_0(%arg0: i32) -> (i32, i32) {
    %c0_i32 = arith.constant 0 : i32
    %c0_i32_0 = arith.constant 0 : i32
    return %arg0, %c0_i32 : i32, i32
  }
  func.func @transform_1(%arg0: i32) -> (i32, i32) {
    %c0_i32 = arith.constant 0 : i32
    %c0_i32_0 = arith.constant 0 : i32
    %c0_i32_1 = arith.constant 0 : i32
    return %c0_i32, %c0_i32_0 : i32, i32
  }
  func.func @transform_2(%arg0: i32) -> (i32, i32) {
    %c0_i32 = arith.constant 0 : i32
    %c0_i32_0 = arith.constant 0 : i32
    %c0_i32_1 = arith.constant 0 : i32
    return %c0_i32, %c0_i32_0 : i32, i32
  }
  func.func @transform_3(%arg0: i32) -> (i32, i32) {
    %c0_i32 = arith.constant 0 : i32
    %c0_i32_0 = arith.constant 0 : i32
    return %arg0, %c0_i32 : i32, i32
  }
}

module attributes {stable_mosaic.version = 11 : i64} {
  func.func @_row_lstm_kernel(%arg0: i32, %arg1: memref<16x32x128xf32, #tpu.memory_space<vmem>>, %arg2: memref<3x32x128xbf16, #tpu.memory_space<vmem>>, %arg3: memref<2x32x128xf32, #tpu.memory_space<vmem>>, %arg4: memref<2x32x32xf32, #tpu.memory_space<vmem>>, %arg5: memref<16x32x32xf32, #tpu.memory_space<vmem>>, %arg6: memref<32x32xf32, #tpu.memory_space<vmem>>, %arg7: memref<32x32xf32, #tpu.memory_space<vmem>>) attributes {dimension_semantics = [#tpu.dimension_semantics<arbitrary>], iteration_bounds = array<i64: 16>, scalar_prefetch = 0 : i64, scratch_operands = 2 : i64, tpu.core_type = #tpu.core_type<tc>, window_params = [{pipeline_mode = #tpu.pipeline_mode<synchronous>, transform_indices = @transform_0, window_bounds = array<i64: 16, 32, 128>}, {pipeline_mode = #tpu.pipeline_mode<synchronous>, transform_indices = @transform_1, window_bounds = array<i64: 3, 32, 128>}, {pipeline_mode = #tpu.pipeline_mode<synchronous>, transform_indices = @transform_2, window_bounds = array<i64: 2, 32, 128>}, {pipeline_mode = #tpu.pipeline_mode<synchronous>, transform_indices = @transform_3, window_bounds = array<i64: 2, 32, 32>}, {pipeline_mode = #tpu.pipeline_mode<synchronous>, transform_indices = @transform_4, window_bounds = array<i64: 16, 32, 32>}]} {
    %c0_i32 = arith.constant 0 : i32
    %0 = arith.cmpi eq, %arg0, %c0_i32 : i32
    %1 = arith.extui %0 : i1 to i32
    %c0_i32_0 = arith.constant 0 : i32
    %2 = arith.cmpi ne, %1, %c0_i32_0 : i32
    scf.if %2 {
      %cst_33 = arith.constant 0.000000e+00 : f32
      %53 = vector.broadcast %cst_33 : f32 to vector<32x32xf32>
      %c0_34 = arith.constant 0 : index
      %c0_35 = arith.constant 0 : index
      %54 = vector.load %arg6[%c0_34, %c0_35] : memref<32x32xf32, #tpu.memory_space<vmem>>, vector<32x32xf32>
      tpu.vector_store %arg6[%c0_34, %c0_35], %53 {strides = array<i32>} : memref<32x32xf32, #tpu.memory_space<vmem>>, vector<32x32xf32>,
      %cst_36 = arith.constant 0.000000e+00 : f32
      %55 = vector.broadcast %cst_36 : f32 to vector<32x32xf32>
      %c0_37 = arith.constant 0 : index
      %c0_38 = arith.constant 0 : index
      %56 = vector.load %arg7[%c0_37, %c0_38] : memref<32x32xf32, #tpu.memory_space<vmem>>, vector<32x32xf32>
      tpu.vector_store %arg7[%c0_37, %c0_38], %55 {strides = array<i32>} : memref<32x32xf32, #tpu.memory_space<vmem>>, vector<32x32xf32>,
    } else {
    }
    %c0 = arith.constant 0 : index
    %c0_1 = arith.constant 0 : index
    %3 = vector.load %arg6[%c0, %c0_1] : memref<32x32xf32, #tpu.memory_space<vmem>>, vector<32x32xf32>
    %c0_2 = arith.constant 0 : index
    %c0_3 = arith.constant 0 : index
    %4 = vector.load %arg7[%c0_2, %c0_3] : memref<32x32xf32, #tpu.memory_space<vmem>>, vector<32x32xf32>
    %c1_i32 = arith.constant 1 : i32
    %5 = tpu.dynamic_rotate %3 by %c1_i32 dim 0 : vector<32x32xf32>, i32 -> vector<32x32xf32>
    %c0_4 = arith.constant 0 : index
    %c0_5 = arith.constant 0 : index
    %c0_6 = arith.constant 0 : index
    %6 = vector.load %arg4[%c0_4, %c0_5, %c0_6] : memref<2x32x32xf32, #tpu.memory_space<vmem>>, vector<1x32x32xf32>
    %7 = vector.shape_cast %6 : vector<1x32x32xf32> to vector<32x32xf32>
    %8 = arith.mulf %5, %7 : vector<32x32xf32>
    %c31_i32 = arith.constant 31 : i32
    %9 = tpu.dynamic_rotate %3 by %c31_i32 dim 0 : vector<32x32xf32>, i32 -> vector<32x32xf32>
    %c1 = arith.constant 1 : index
    %c0_7 = arith.constant 0 : index
    %c0_8 = arith.constant 0 : index
    %10 = vector.load %arg4[%c1, %c0_7, %c0_8] : memref<2x32x32xf32, #tpu.memory_space<vmem>>, vector<1x32x32xf32>
    %11 = vector.shape_cast %10 : vector<1x32x32xf32> to vector<32x32xf32>
    %12 = arith.mulf %9, %11 : vector<32x32xf32>
    %13 = arith.index_cast %arg0 : i32 to index
    %c0_9 = arith.constant 0 : index
    %c0_10 = arith.constant 0 : index
    %14 = vector.load %arg1[%13, %c0_9, %c0_10] : memref<16x32x128xf32, #tpu.memory_space<vmem>>, vector<1x32x128xf32>
    %15 = vector.shape_cast %14 : vector<1x32x128xf32> to vector<32x128xf32>
    %16 = arith.truncf %8 : vector<32x32xf32> to vector<32x32xbf16>
    %c0_11 = arith.constant 0 : index
    %c0_12 = arith.constant 0 : index
    %c0_13 = arith.constant 0 : index
    %17 = vector.load %arg2[%c0_11, %c0_12, %c0_13] : memref<3x32x128xbf16, #tpu.memory_space<vmem>>, vector<1x32x128xbf16>
    %18 = vector.shape_cast %17 : vector<1x32x128xbf16> to vector<32x128xbf16>
    %cst = arith.constant dense<0.000000e+00> : vector<32x128xf32>
    %19 = tpu.matmul %16, %18, %cst {dimension_numbers = #tpu.dot_dimension_numbers<[1], [0], [0], [1], [0, 0, 1, 1], [], []>} : vector<32x32xbf16>, vector<32x128xbf16>, vector<32x128xf32> -> vector<32x128xf32>
    %20 = arith.addf %15, %19 : vector<32x128xf32>
    %21 = arith.truncf %3 : vector<32x32xf32> to vector<32x32xbf16>
    %c1_14 = arith.constant 1 : index
    %c0_15 = arith.constant 0 : index
    %c0_16 = arith.constant 0 : index
    %22 = vector.load %arg2[%c1_14, %c0_15, %c0_16] : memref<3x32x128xbf16, #tpu.memory_space<vmem>>, vector<1x32x128xbf16>
    %23 = vector.shape_cast %22 : vector<1x32x128xbf16> to vector<32x128xbf16>
    %cst_17 = arith.constant dense<0.000000e+00> : vector<32x128xf32>
    %24 = tpu.matmul %21, %23, %cst_17 {dimension_numbers = #tpu.dot_dimension_numbers<[1], [0], [0], [1], [0, 0, 1, 1], [], []>} : vector<32x32xbf16>, vector<32x128xbf16>, vector<32x128xf32> -> vector<32x128xf32>
    %25 = arith.addf %20, %24 : vector<32x128xf32>
    %26 = arith.truncf %12 : vector<32x32xf32> to vector<32x32xbf16>
    %c2 = arith.constant 2 : index
    %c0_18 = arith.constant 0 : index
    %c0_19 = arith.constant 0 : index
    %27 = vector.load %arg2[%c2, %c0_18, %c0_19] : memref<3x32x128xbf16, #tpu.memory_space<vmem>>, vector<1x32x128xbf16>
    %28 = vector.shape_cast %27 : vector<1x32x128xbf16> to vector<32x128xbf16>
    %cst_20 = arith.constant dense<0.000000e+00> : vector<32x128xf32>
    %29 = tpu.matmul %26, %28, %cst_20 {dimension_numbers = #tpu.dot_dimension_numbers<[1], [0], [0], [1], [0, 0, 1, 1], [], []>} : vector<32x32xbf16>, vector<32x128xbf16>, vector<32x128xf32> -> vector<32x128xf32>
    %30 = arith.addf %25, %29 : vector<32x128xf32>
    %31 = math.tanh %30 : vector<32x128xf32>
    %c0_21 = arith.constant 0 : index
    %c0_22 = arith.constant 0 : index
    %c0_23 = arith.constant 0 : index
    %32 = vector.load %arg3[%c0_21, %c0_22, %c0_23] : memref<2x32x128xf32, #tpu.memory_space<vmem>>, vector<1x32x128xf32>
    %33 = vector.shape_cast %32 : vector<1x32x128xf32> to vector<32x128xf32>
    %34 = arith.mulf %31, %33 : vector<32x128xf32>
    %c1_24 = arith.constant 1 : index
    %c0_25 = arith.constant 0 : index
    %c0_26 = arith.constant 0 : index
    %35 = vector.load %arg3[%c1_24, %c0_25, %c0_26] : memref<2x32x128xf32, #tpu.memory_space<vmem>>, vector<1x32x128xf32>
    %36 = vector.shape_cast %35 : vector<1x32x128xf32> to vector<32x128xf32>
    %37 = arith.addf %34, %36 : vector<32x128xf32>
    %38 = vector.extract_strided_slice %37 {offsets = [0, 0], sizes = [32, 32], strides = [1, 1]} : vector<32x128xf32> to vector<32x32xf32>
    %39 = vector.extract_strided_slice %37 {offsets = [0, 32], sizes = [32, 32], strides = [1, 1]} : vector<32x128xf32> to vector<32x32xf32>
    %40 = vector.extract_strided_slice %37 {offsets = [0, 64], sizes = [32, 32], strides = [1, 1]} : vector<32x128xf32> to vector<32x32xf32>
    %41 = vector.extract_strided_slice %37 {offsets = [0, 96], sizes = [32, 32], strides = [1, 1]} : vector<32x128xf32> to vector<32x32xf32>
    %42 = arith.mulf %39, %4 : vector<32x32xf32>
    %43 = arith.mulf %38, %40 : vector<32x32xf32>
    %44 = arith.addf %42, %43 : vector<32x32xf32>
    %45 = math.tanh %44 : vector<32x32xf32>
    %46 = arith.mulf %41, %45 : vector<32x32xf32>
    %c0_27 = arith.constant 0 : index
    %c0_28 = arith.constant 0 : index
    %47 = vector.load %arg6[%c0_27, %c0_28] : memref<32x32xf32, #tpu.memory_space<vmem>>, vector<32x32xf32>
    tpu.vector_store %arg6[%c0_27, %c0_28], %46 {strides = array<i32>} : memref<32x32xf32, #tpu.memory_space<vmem>>, vector<32x32xf32>,
    %c0_29 = arith.constant 0 : index
    %c0_30 = arith.constant 0 : index
    %48 = vector.load %arg7[%c0_29, %c0_30] : memref<32x32xf32, #tpu.memory_space<vmem>>, vector<32x32xf32>
    tpu.vector_store %arg7[%c0_29, %c0_30], %44 {strides = array<i32>} : memref<32x32xf32, #tpu.memory_space<vmem>>, vector<32x32xf32>,
    %49 = arith.index_cast %arg0 : i32 to index
    %c0_31 = arith.constant 0 : index
    %c0_32 = arith.constant 0 : index
    %50 = vector.load %arg5[%49, %c0_31, %c0_32] : memref<16x32x32xf32, #tpu.memory_space<vmem>>, vector<1x32x32xf32>
    %51 = vector.shape_cast %50 : vector<1x32x32xf32> to vector<32x32xf32>
    %52 = vector.shape_cast %46 : vector<32x32xf32> to vector<1x32x32xf32>
    tpu.vector_store %arg5[%49, %c0_31, %c0_32], %52 {strides = array<i32>} : memref<16x32x32xf32, #tpu.memory_space<vmem>>, vector<1x32x32xf32>,
    return
  }
  func.func @transform_0(%arg0: i32) -> (i32, i32, i32) {
    %c0_i32 = arith.constant 0 : i32
    %c0_i32_0 = arith.constant 0 : i32
    %c0_i32_1 = arith.constant 0 : i32
    %c0_i32_2 = arith.constant 0 : i32
    return %c0_i32, %c0_i32_0, %c0_i32_1 : i32, i32, i32
  }
  func.func @transform_1(%arg0: i32) -> (i32, i32, i32) {
    %c0_i32 = arith.constant 0 : i32
    %c0_i32_0 = arith.constant 0 : i32
    %c0_i32_1 = arith.constant 0 : i32
    %c0_i32_2 = arith.constant 0 : i32
    return %c0_i32, %c0_i32_0, %c0_i32_1 : i32, i32, i32
  }
  func.func @transform_2(%arg0: i32) -> (i32, i32, i32) {
    %c0_i32 = arith.constant 0 : i32
    %c0_i32_0 = arith.constant 0 : i32
    %c0_i32_1 = arith.constant 0 : i32
    %c0_i32_2 = arith.constant 0 : i32
    return %c0_i32, %c0_i32_0, %c0_i32_1 : i32, i32, i32
  }
  func.func @transform_3(%arg0: i32) -> (i32, i32, i32) {
    %c0_i32 = arith.constant 0 : i32
    %c0_i32_0 = arith.constant 0 : i32
    %c0_i32_1 = arith.constant 0 : i32
    %c0_i32_2 = arith.constant 0 : i32
    return %c0_i32, %c0_i32_0, %c0_i32_1 : i32, i32, i32
  }
  func.func @transform_4(%arg0: i32) -> (i32, i32, i32) {
    %c0_i32 = arith.constant 0 : i32
    %c0_i32_0 = arith.constant 0 : i32
    %c0_i32_1 = arith.constant 0 : i32
    %c0_i32_2 = arith.constant 0 : i32
    return %c0_i32, %c0_i32_0, %c0_i32_1 : i32, i32, i32
  }
}

</mosaic_0001>

<llo_original>
// kernel: rowlstm_forward.2
$region0: #{rowlstm_forward.2}
  #allocation0 [shape = 'u32[]', space=smem, size = 0x4, offset = 0x4, fixed_abs, tag = 'smem constant byte address 0x4 - core index']
  #allocation1 [shape = 'u32[144,128]{1,0:T(1,128)}', space=vmem, size = 0x12000, scoped, tag = 'internal scratch']
  %s0 = inlined_call_operand.vmem [shape: bf16[512,48], index: 0, kind: input, shape index: {}]
  %s1 = inlined_call_operand.vmem [shape: bf16[48,128], index: 1, kind: input, shape index: {}]
  %s2 = inlined_call_operand.vmem [shape: f32[1,128], index: 2, kind: input, shape index: {}]
  %s3 = inlined_call_operand.vmem [shape: f32[512,128], index: 3, kind: output, shape index: {}]
  %s4 = sld [smem:[#allocation0]]
  $region45: #{rowlstm_forward.2} parent=0
    _
  %s6 = ssub.s32 1, %s4
  %s7 = scalar_select 0, %s6, %s4
  loop: start=0, step=1, limit=4
  $region2: #{rowlstm_forward.2} parent=0 // loop_pre_header
    _
  $region3: #{rowlstm_forward.2} parent=0 // loop_header
    %s9 = sphi 0, %s13
    %p10 = scmp.ge.s32.totalorder %s9, 4
    %s19 = sphi 0, %s21
    %s22 = sphi 0, %s19
    %s23 = sphi 0, %s22
    %s39 = sphi 0, %s23
    %s43 = sphi 0, %s43
    %s45 = sphi 0, %s43
    %s46 = sphi 0, %s45
    %s60 = sphi 0, %s46
    %s64 = sphi 0, %s64
    %s66 = sphi 0, %s64
    %s67 = sphi 0, %s66
    %s81 = sphi 0, %s67
    %s87 = sphi 0, %s89
    %s90 = sphi 0, %s87
    %s91 = sphi 0, %s90
    %s107 = sphi 0, %s91
  $region4: #{rowlstm_forward.2} parent=0 // loop_header_branch
    %12 = sbr.rel (%p10) target = $region8
  $region5: #{rowlstm_forward.2} parent=0 // loop_body
    %s14 = ssub.s32 %s9, 1
    %s15 = ssub.s32 %s9, 2
    %s16 = sadd.s32 %s9, 1
    %s17 = ssub.s32 %s9, %s16
    %p18 = scmp.eq.s32.totalorder %s17, 0
    %s20 = sadd.s32 %s19, 1
    %s21 = scalar_select %p18, %s19, %s20
    %p24 = pneg %p18
    %p25 = scmp.eq.s32.totalorder %s9, 1
    %p26 = por %p24, %p25
    %p27 = scmp.ne.s32.totalorder %s19, %s22
    %p28 = scmp.eq.s32.totalorder %s9, 0
    %p29 = por %p27, %p28
    %p30 = scmp.ne.s32.totalorder %s19, %s22
    %p31 = scmp.eq.s32.totalorder %s14, 1
    %p32 = por %p30, %p31
    %p33 = scmp.ne.s32.totalorder %s22, %s23
    %p34 = scmp.eq.s32.totalorder %s14, 0
    %p35 = por %p33, %p34
    %p36 = scmp.ne.s32.totalorder %s22, %s23
    %p37 = scmp.eq.s32.totalorder %s15, 1
    %p38 = por %p36, %p37
    %p40 = scmp.ne.s32.totalorder %s23, %s39
    %p41 = scmp.eq.s32.totalorder %s15, 0
    %p42 = por %p40, %p41
    %s44 = sadd.s32 %s43, 1
    %p47 = scmp.eq.s32.totalorder %s9, 1
    %p48 = scmp.ne.s32.totalorder %s43, %s45
    %p49 = scmp.eq.s32.totalorder %s9, 0
    %p50 = por %p48, %p49
    %p51 = scmp.ne.s32.totalorder %s43, %s45
    %p52 = scmp.eq.s32.totalorder %s14, 1
    %p53 = por %p51, %p52
    %p54 = scmp.ne.s32.totalorder %s45, %s46
    %p55 = scmp.eq.s32.totalorder %s14, 0
    %p56 = por %p54, %p55
    %p57 = scmp.ne.s32.totalorder %s45, %s46
    %p58 = scmp.eq.s32.totalorder %s15, 1
    %p59 = por %p57, %p58
    %p61 = scmp.ne.s32.totalorder %s46, %s60
    %p62 = scmp.eq.s32.totalorder %s15, 0
    %p63 = por %p61, %p62
    %s65 = sadd.s32 %s64, 1
    %p68 = scmp.eq.s32.totalorder %s9, 1
    %p69 = scmp.ne.s32.totalorder %s64, %s66
    %p70 = scmp.eq.s32.totalorder %s9, 0
    %p71 = por %p69, %p70
    %p72 = scmp.ne.s32.totalorder %s64, %s66
    %p73 = scmp.eq.s32.totalorder %s14, 1
    %p74 = por %p72, %p73
    %p75 = scmp.ne.s32.totalorder %s66, %s67
    %p76 = scmp.eq.s32.totalorder %s14, 0
    %p77 = por %p75, %p76
    %p78 = scmp.ne.s32.totalorder %s66, %s67
    %p79 = scmp.eq.s32.totalorder %s15, 1
    %p80 = por %p78, %p79
    %p82 = scmp.ne.s32.totalorder %s67, %s81
    %p83 = scmp.eq.s32.totalorder %s15, 0
    %p84 = por %p82, %p83
    %s85 = ssub.s32 %s9, %s16
    %p86 = scmp.eq.s32.totalorder %s85, 0
    %s88 = sadd.s32 %s87, 1
    %s89 = scalar_select %p86, %s87, %s88
    %p92 = pneg %p86
    %p93 = scmp.eq.s32.totalorder %s9, 1
    %p94 = por %p92, %p93
    %p95 = scmp.ne.s32.totalorder %s87, %s90
    %p96 = scmp.eq.s32.totalorder %s9, 0
    %p97 = por %p95, %p96
    %p98 = scmp.ne.s32.totalorder %s87, %s90
    %p99 = scmp.eq.s32.totalorder %s14, 1
    %p100 = por %p98, %p99
    %p101 = scmp.ne.s32.totalorder %s90, %s91
    %p102 = scmp.eq.s32.totalorder %s14, 0
    %p103 = por %p101, %p102
    %p104 = scmp.ne.s32.totalorder %s90, %s91
    %p105 = scmp.eq.s32.totalorder %s15, 1
    %p106 = por %p104, %p105
    %p108 = scmp.ne.s32.totalorder %s91, %s107
    %p109 = scmp.eq.s32.totalorder %s15, 0
    %p110 = por %p108, %p109
    %p111 = scmp.le.s32.totalorder 1, %s9
    %p112 = scmp.lt.s32.totalorder %s9, 3
    %p113 = pnand %p111, %p112
    %p114 = pneg %p113
    // Predicated region
    $region9: #{rowlstm_forward.2} parent=5 // pred_check
      _
    $region10: #{rowlstm_forward.2} parent=5 // pred_check_branch
      %116 = sbr.rel (%p113) target = $region12
    $region11: #{rowlstm_forward.2} parent=5 // pred_region
      %s117 = ssub.s32 %s9, 1
      // Predicated region
      $region13: #{rowlstm_forward.2} parent=11 // pred_check
        %p118 = pneg %p56
      $region14: #{rowlstm_forward.2} parent=11 // pred_check_branch
        %120 = sbr.rel (%p118) target = $region16
      $region15: #{rowlstm_forward.2} parent=11 // pred_region
        _
      $region16: #{rowlstm_forward.2} parent=11 // pred_fallthru
        _
      // Predicated region
      $region17: #{rowlstm_forward.2} parent=11 // pred_check
        %p121 = pneg %p77
      $region18: #{rowlstm_forward.2} parent=11 // pred_check_branch
        %123 = sbr.rel (%p121) target = $region20
      $region19: #{rowlstm_forward.2} parent=11 // pred_region
        _
      $region20: #{rowlstm_forward.2} parent=11 // pred_fallthru
        _
    $region12: #{rowlstm_forward.2} parent=5 // pred_fallthru
      _
    %p124 = scmp.lt.s32.totalorder %s9, 2
    // Predicated region
    $region21: #{rowlstm_forward.2} parent=5 // pred_check
      %p125 = pneg %p124
    $region22: #{rowlstm_forward.2} parent=5 // pred_check_branch
      %127 = sbr.rel (%p125) target = $region24
    $region23: #{rowlstm_forward.2} parent=5 // pred_region
      // Predicated region
      $region25: #{rowlstm_forward.2} parent=23 // pred_check
        %p128 = pneg %p29
      $region26: #{rowlstm_forward.2} parent=23 // pred_check_branch
        %130 = sbr.rel (%p128) target = $region28
      $region27: #{rowlstm_forward.2} parent=23 // pred_region
        %s131 = smul.u32 32, %s9
        %p132 = scmp.lt.s32.totalorder %s131, 63
        %s133 = scalar_select %p132, %s131, 63
        %s134 = smul.addr %s133, 4
        %s135 = scalar_lea.vmem %s0, %s134
        %s136 = smul.u32 32, %s9
      $region28: #{rowlstm_forward.2} parent=23 // pred_fallthru
        _
    $region24: #{rowlstm_forward.2} parent=5 // pred_fallthru
      _
    %p137 = scmp.le.s32.totalorder 1, %s9
    %p138 = scmp.lt.s32.totalorder %s9, 3
    %p139 = pnand %p137, %p138
    %p140 = pneg %p139
    // Predicated region
    $region29: #{rowlstm_forward.2} parent=5 // pred_check
      _
    $region30: #{rowlstm_forward.2} parent=5 // pred_check_branch
      %142 = sbr.rel (%p139) target = $region32
    $region31: #{rowlstm_forward.2} parent=5 // pred_region
      %s143 = ssub.s32 %s9, 1
      %s144 = smul.u32 32, %s14
      %p145 = scmp.lt.s32.totalorder %s144, 63
      %s146 = scalar_select %p145, %s144, 63
      %s147 = smul.addr %s146, 4
      %s148 = scalar_lea.vmem %s0, %s147
      %p149 = pneg %p35
      %p150 = pneg %p32
      %p151 = pneg %p56
      %p152 = pneg %p53
      %p153 = pneg %p77
      %p154 = pneg %p74
      %p155 = pneg %p103
      %p156 = pneg %p100
      %s157 = smul.u32 32, %s14
      %p158 = scmp.lt.s32.totalorder %s157, 63
      %s159 = scalar_select %p158, %s157, 63
      %s160 = smul.addr %s159, 8
      %s161 = scalar_lea.vmem %s3, %s160
      %s162 = smul.u32 32, %s14
      %p163 = scmp.lt.s32.totalorder %s162, 63
      %s164 = scalar_select %p163, %s162, 63
      %s165 = smul.addr %s164, 4
      %s166 = scalar_lea.vmem %s0, %s165
      %s167 = smul.u32 32, %s14
      %s168 = smul.u32 32, %s14
      %p169 = scmp.lt.s32.totalorder %s168, 63
      %s170 = scalar_select %p169, %s168, 63
      %s171 = smul.addr %s170, 8
      %s172 = scalar_lea.vmem %s3, %s171
      %s173 = smul.u32 32, %s14
      %v175 = vld [vmem:[%s166] sm:$0xf]
      %v176 = vld [vmem:[%s166 + $0x4] sm:$0xf]
      %v177 = vld [vmem:[%s166 + $0x8] sm:$0xf]
      %v178 = vld [vmem:[%s166 + $0xc] sm:$0xf]
      %v179 = vld [vmem:[%s166 + $0x10] sm:$0xf]
      %v180 = vld [vmem:[%s166 + $0x14] sm:$0xf]
      %v181 = vld [vmem:[%s166 + $0x18] sm:$0xf]
      %v182 = vld [vmem:[%s166 + $0x1c] sm:$0xf]
      %v183 = vld [vmem:[%s166 + $0x20] sm:$0xf]
      %v184 = vld [vmem:[%s166 + $0x24] sm:$0xf]
      %v185 = vld [vmem:[%s166 + $0x28] sm:$0xf]
      %v186 = vld [vmem:[%s166 + $0x2c] sm:$0xf]
      %v187 = vld [vmem:[%s166 + $0x30] sm:$0xf]
      %v188 = vld [vmem:[%s166 + $0x34] sm:$0xf]
      %v189 = vld [vmem:[%s166 + $0x38] sm:$0xf]
      %v190 = vld [vmem:[%s166 + $0x3c] sm:$0xf]
      %v191 = vld [vmem:[%s166 + $0x40] sm:$0xf]
      %v192 = vld [vmem:[%s166 + $0x44] sm:$0xf]
      %v193 = vld [vmem:[%s166 + $0x48] sm:$0xf]
      %v194 = vld [vmem:[%s166 + $0x4c] sm:$0xf]
      %v195 = vld [vmem:[%s166 + $0x50] sm:$0xf]
      %v196 = vld [vmem:[%s166 + $0x54] sm:$0xf]
      %v197 = vld [vmem:[%s166 + $0x58] sm:$0xf]
      %v198 = vld [vmem:[%s166 + $0x5c] sm:$0xf]
      %v199 = vld [vmem:[%s166 + $0x60] sm:$0xf]
      %v200 = vld [vmem:[%s166 + $0x64] sm:$0xf]
      %v201 = vld [vmem:[%s166 + $0x68] sm:$0xf]
      %v202 = vld [vmem:[%s166 + $0x6c] sm:$0xf]
      %v203 = vld [vmem:[%s166 + $0x70] sm:$0xf]
      %v204 = vld [vmem:[%s166 + $0x74] sm:$0xf]
      %v205 = vld [vmem:[%s166 + $0x78] sm:$0xf]
      %v206 = vld [vmem:[%s166 + $0x7c] sm:$0xf]
      %v207 = vld [vmem:[%s1] sm:$0xf]
      %v208 = vld [vmem:[%s1 + $0x4] sm:$0xf]
      %v209 = vld [vmem:[%s1 + $0x8] sm:$0xf]
      %v210 = vld [vmem:[%s1 + $0xc] sm:$0xf]
      %v211 = vld [vmem:[%s1 + $0x10] sm:$0xf]
      %v212 = vld [vmem:[%s1 + $0x14] sm:$0xf]
      %v213 = vld [vmem:[%s2] sm:$0x1]
      %v215 = vlaneseq
      %v216 = vshrl.u32 %v215, 7
      %v217 = vsub.s32 0, %v216
      %v218 = vrot.slane %v213, %v217
      %v252 = vunpack.c.l.b16 %v175
      %v253 = vunpack.c.l.b16 %v176
      %v254 = vunpack.c.l.b16 %v177
      %v255 = vunpack.c.l.b16 %v178
      %v256 = vunpack.c.l.b16 %v179
      %v257 = vunpack.c.l.b16 %v180
      %v258 = vunpack.c.l.b16 %v181
      %v259 = vunpack.c.l.b16 %v182
      %v260 = vunpack.c.l.b16 %v183
      %v261 = vunpack.c.l.b16 %v184
      %v262 = vunpack.c.l.b16 %v185
      %v263 = vunpack.c.l.b16 %v186
      %v264 = vunpack.c.l.b16 %v187
      %v265 = vunpack.c.l.b16 %v188
      %v266 = vunpack.c.l.b16 %v189
      %v267 = vunpack.c.l.b16 %v190
      %v268 = vunpack.c.l.b16 %v191
      %v269 = vunpack.c.l.b16 %v192
      %v270 = vunpack.c.l.b16 %v193
      %v271 = vunpack.c.l.b16 %v194
      %v272 = vunpack.c.l.b16 %v195
      %v273 = vunpack.c.l.b16 %v196
      %v274 = vunpack.c.l.b16 %v197
      %v275 = vunpack.c.l.b16 %v198
      %v276 = vunpack.c.l.b16 %v199
      %v277 = vunpack.c.l.b16 %v200
      %v278 = vunpack.c.l.b16 %v201
      %v279 = vunpack.c.l.b16 %v202
      %v280 = vunpack.c.l.b16 %v203
      %v281 = vunpack.c.l.b16 %v204
      %v282 = vunpack.c.l.b16 %v205
      %v283 = vunpack.c.l.b16 %v206
      %v284 = vpack.c.b16 %v253, %v252
      %v285 = vpack.c.b16 %v255, %v254
      %v286 = vpack.c.b16 %v257, %v256
      %v287 = vpack.c.b16 %v259, %v258
      %v288 = vpack.c.b16 %v261, %v260
      %v289 = vpack.c.b16 %v263, %v262
      %v290 = vpack.c.b16 %v265, %v264
      %v291 = vpack.c.b16 %v267, %v266
      %v292 = vpack.c.b16 %v269, %v268
      %v293 = vpack.c.b16 %v271, %v270
      %v294 = vpack.c.b16 %v273, %v272
      %v295 = vpack.c.b16 %v275, %v274
      %v296 = vpack.c.b16 %v277, %v276
      %v297 = vpack.c.b16 %v279, %v278
      %v298 = vpack.c.b16 %v281, %v280
      %v299 = vpack.c.b16 %v283, %v282
      %v306 = vunpack.c.l.b16 %v207
      %v307 = vunpack.c.l.b16 %v208
      %v308 = vunpack.c.l.b16 %v209
      %v309 = vunpack.c.l.b16 %v210
      %v310 = vunpack.c.l.b16 %v211
      %v311 = vunpack.c.l.b16 %v212
      %v312 = vpack.c.b16 %v307, %v306
      %v313 = vpack.c.b16 %v309, %v308
      %v314 = vpack.c.b16 %v311, %v310
      %vm318 = vcmask 392192
      %v320 = vsel %vm318, %v284, 0
      %v323 = vsel %vm318, %v285, 0
      %v326 = vsel %vm318, %v286, 0
      %v329 = vsel %vm318, %v287, 0
      %v332 = vsel %vm318, %v288, 0
      %v335 = vsel %vm318, %v289, 0
      %v338 = vsel %vm318, %v290, 0
      %v341 = vsel %vm318, %v291, 0
      %v344 = vsel %vm318, %v292, 0
      %v347 = vsel %vm318, %v293, 0
      %v350 = vsel %vm318, %v294, 0
      %v353 = vsel %vm318, %v295, 0
      %v356 = vsel %vm318, %v296, 0
      %v359 = vsel %vm318, %v297, 0
      %v362 = vsel %vm318, %v298, 0
      %v365 = vsel %vm318, %v299, 0
      %367 = vmatprep.subr.bf16.mxu0 0
      %368 = vmatpush1.bf16.msra.mxu0 %v312
      %369 = vmatprep.subr.bf16.mxu0 0
      %370 = vmatpush1.bf16.msra.mxu0 %v313
      %371 = vmatprep.subr.bf16.mxu0 0
      %372 = vmatpush1.bf16.msra.mxu0 %v314
      %373 = vmatprep.subr.bf16.mxu0 0
      %374 = vmatpush1.bf16.msra.mxu0 0
      %375 = vmatprep.subr.bf16.mxu0 0
      %376 = vmatpush1.bf16.msra.mxu0 0
      %377 = vmatprep.subr.bf16.mxu0 0
      %378 = vmatpush1.bf16.msra.mxu0 0
      %379 = vmatprep.subr.bf16.mxu0 0
      %380 = vmatpush1.bf16.msra.mxu0 0
      %381 = vmatprep.subr.bf16.mxu0 0
      %382 = vmatpush1.bf16.msra.mxu0 0
      %383 = vmatprep.subr.bf16.mxu0 0
      %384 = vmatpush1.bf16.msra.mxu0 0
      %385 = vmatprep.subr.bf16.mxu0 0
      %386 = vmatpush1.bf16.msra.mxu0 0
      %387 = vmatprep.subr.bf16.mxu0 0
      %388 = vmatpush1.bf16.msra.mxu0 0
      %389 = vmatprep.subr.bf16.mxu0 0
      %390 = vmatpush1.bf16.msra.mxu0 0
      %391 = vmatprep.subr.bf16.mxu0 0
      %392 = vmatpush1.bf16.msra.mxu0 0
      %393 = vmatprep.subr.bf16.mxu0 0
      %394 = vmatpush1.bf16.msra.mxu0 0
      %395 = vmatprep.subr.bf16.mxu0 0
      %396 = vmatpush1.bf16.msra.mxu0 0
      %397 = vmatprep.subr.bf16.mxu0 0
      %398 = vmatpush1.bf16.msra.mxu0 0
      %399 = vmatprep.mubr.bf16.mxu0 0
      %400 = vmatmul.mubr.bf16.gmra.mrb[0].mxu0 %v320
      %v401 = vpop.f32.mrb[0].mxu0
      %v402 = vadd.f32 %v218, %v401
      %v403 = vpop.f32.mrb[0].mxu0
      %v404 = vpop.f32.mrb[0].mxu0
      %v405 = vadd.f32 %v218, %v404
      %v406 = vpop.f32.mrb[0].mxu0
      %407 = vmatprep.mubr.bf16.mxu0 0
      %408 = vmatmul.mubr.bf16.gmra.mrb[0].mxu0 %v323
      %v409 = vpop.f32.mrb[0].mxu0
      %v410 = vadd.f32 %v218, %v409
      %v411 = vpop.f32.mrb[0].mxu0
      %v412 = vpop.f32.mrb[0].mxu0
      %v413 = vadd.f32 %v218, %v412
      %v414 = vpop.f32.mrb[0].mxu0
      %415 = vmatprep.mubr.bf16.mxu0 0
      %416 = vmatmul.mubr.bf16.gmra.mrb[0].mxu0 %v326
      %v417 = vpop.f32.mrb[0].mxu0
      %v418 = vadd.f32 %v218, %v417
      %v419 = vpop.f32.mrb[0].mxu0
      %v420 = vpop.f32.mrb[0].mxu0
      %v421 = vadd.f32 %v218, %v420
      %v422 = vpop.f32.mrb[0].mxu0
      %423 = vmatprep.mubr.bf16.mxu0 0
      %424 = vmatmul.mubr.bf16.gmra.mrb[0].mxu0 %v329
      %v425 = vpop.f32.mrb[0].mxu0
      %v426 = vadd.f32 %v218, %v425
      %v427 = vpop.f32.mrb[0].mxu0
      %v428 = vpop.f32.mrb[0].mxu0
      %v429 = vadd.f32 %v218, %v428
      %v430 = vpop.f32.mrb[0].mxu0
      %431 = vmatprep.mubr.bf16.mxu0 0
      %432 = vmatmul.mubr.bf16.gmra.mrb[0].mxu0 %v332
      %v433 = vpop.f32.mrb[0].mxu0
      %v434 = vadd.f32 %v218, %v433
      %v435 = vpop.f32.mrb[0].mxu0
      %v436 = vpop.f32.mrb[0].mxu0
      %v437 = vadd.f32 %v218, %v436
      %v438 = vpop.f32.mrb[0].mxu0
      %439 = vmatprep.mubr.bf16.mxu0 0
      %440 = vmatmul.mubr.bf16.gmra.mrb[0].mxu0 %v335
      %v441 = vpop.f32.mrb[0].mxu0
      %v442 = vadd.f32 %v218, %v441
      %v443 = vpop.f32.mrb[0].mxu0
      %v444 = vpop.f32.mrb[0].mxu0
      %v445 = vadd.f32 %v218, %v444
      %v446 = vpop.f32.mrb[0].mxu0
      %447 = vmatprep.mubr.bf16.mxu0 0
      %448 = vmatmul.mubr.bf16.gmra.mrb[0].mxu0 %v338
      %v449 = vpop.f32.mrb[0].mxu0
      %v450 = vadd.f32 %v218, %v449
      %v451 = vpop.f32.mrb[0].mxu0
      %v452 = vpop.f32.mrb[0].mxu0
      %v453 = vadd.f32 %v218, %v452
      %v454 = vpop.f32.mrb[0].mxu0
      %455 = vmatprep.mubr.bf16.mxu0 0
      %456 = vmatmul.mubr.bf16.gmra.mrb[0].mxu0 %v341
      %v457 = vpop.f32.mrb[0].mxu0
      %v458 = vadd.f32 %v218, %v457
      %v459 = vpop.f32.mrb[0].mxu0
      %v460 = vpop.f32.mrb[0].mxu0
      %v461 = vadd.f32 %v218, %v460
      %v462 = vpop.f32.mrb[0].mxu0
      %463 = vmatprep.mubr.bf16.mxu0 0
      %464 = vmatmul.mubr.bf16.gmra.mrb[0].mxu0 %v344
      %v465 = vpop.f32.mrb[0].mxu0
      %v466 = vadd.f32 %v218, %v465
      %v467 = vpop.f32.mrb[0].mxu0
      %v468 = vpop.f32.mrb[0].mxu0
      %v469 = vadd.f32 %v218, %v468
      %v470 = vpop.f32.mrb[0].mxu0
      %471 = vmatprep.mubr.bf16.mxu0 0
      %472 = vmatmul.mubr.bf16.gmra.mrb[0].mxu0 %v347
      %v473 = vpop.f32.mrb[0].mxu0
      %v474 = vadd.f32 %v218, %v473
      %v475 = vpop.f32.mrb[0].mxu0
      %v476 = vpop.f32.mrb[0].mxu0
      %v477 = vadd.f32 %v218, %v476
      %v478 = vpop.f32.mrb[0].mxu0
      %479 = vmatprep.mubr.bf16.mxu0 0
      %480 = vmatmul.mubr.bf16.gmra.mrb[0].mxu0 %v350
      %v481 = vpop.f32.mrb[0].mxu0
      %v482 = vadd.f32 %v218, %v481
      %v483 = vpop.f32.mrb[0].mxu0
      %v484 = vpop.f32.mrb[0].mxu0
      %v485 = vadd.f32 %v218, %v484
      %v486 = vpop.f32.mrb[0].mxu0
      %487 = vmatprep.mubr.bf16.mxu0 0
      %488 = vmatmul.mubr.bf16.gmra.mrb[0].mxu0 %v353
      %v489 = vpop.f32.mrb[0].mxu0
      %v490 = vadd.f32 %v218, %v489
      %v491 = vpop.f32.mrb[0].mxu0
      %v492 = vpop.f32.mrb[0].mxu0
      %v493 = vadd.f32 %v218, %v492
      %v494 = vpop.f32.mrb[0].mxu0
      %495 = vmatprep.mubr.bf16.mxu0 0
      %496 = vmatmul.mubr.bf16.gmra.mrb[0].mxu0 %v356
      %v497 = vpop.f32.mrb[0].mxu0
      %v498 = vadd.f32 %v218, %v497
      %v499 = vpop.f32.mrb[0].mxu0
      %v500 = vpop.f32.mrb[0].mxu0
      %v501 = vadd.f32 %v218, %v500
      %v502 = vpop.f32.mrb[0].mxu0
      %503 = vmatprep.mubr.bf16.mxu0 0
      %504 = vmatmul.mubr.bf16.gmra.mrb[0].mxu0 %v359
      %v505 = vpop.f32.mrb[0].mxu0
      %v506 = vadd.f32 %v218, %v505
      %v507 = vpop.f32.mrb[0].mxu0
      %v508 = vpop.f32.mrb[0].mxu0
      %v509 = vadd.f32 %v218, %v508
      %v510 = vpop.f32.mrb[0].mxu0
      %511 = vmatprep.mubr.bf16.mxu0 0
      %512 = vmatmul.mubr.bf16.gmra.mrb[0].mxu0 %v362
      %v513 = vpop.f32.mrb[0].mxu0
      %v514 = vadd.f32 %v218, %v513
      %v515 = vpop.f32.mrb[0].mxu0
      %v516 = vpop.f32.mrb[0].mxu0
      %v517 = vadd.f32 %v218, %v516
      %v518 = vpop.f32.mrb[0].mxu0
      %519 = vmatprep.mubr.bf16.mxu0 0
      %520 = vmatmul.mubr.bf16.gmra.mrb[0].mxu0 %v365
      %v521 = vpop.f32.mrb[0].mxu0
      %v522 = vadd.f32 %v218, %v521
      %v523 = vpop.f32.mrb[0].mxu0
      %v524 = vpop.f32.mrb[0].mxu0
      %v525 = vadd.f32 %v218, %v524
      %v526 = vpop.f32.mrb[0].mxu0
      %527 = vdwg.mxu0
      %528 = vst [vmem:[%s172] sm:$0xff] %v402
      %529 = vst [vmem:[%s172 + $0x8] sm:$0xff] %v405
      %530 = vst [vmem:[%s172 + $0x10] sm:$0xff] %v410
      %531 = vst [vmem:[%s172 + $0x18] sm:$0xff] %v413
      %532 = vst [vmem:[%s172 + $0x20] sm:$0xff] %v418
      %533 = vst [vmem:[%s172 + $0x28] sm:$0xff] %v421
      %534 = vst [vmem:[%s172 + $0x30] sm:$0xff] %v426
      %535 = vst [vmem:[%s172 + $0x38] sm:$0xff] %v429
      %536 = vst [vmem:[%s172 + $0x40] sm:$0xff] %v434
      %537 = vst [vmem:[%s172 + $0x48] sm:$0xff] %v437
      %538 = vst [vmem:[%s172 + $0x50] sm:$0xff] %v442
      %539 = vst [vmem:[%s172 + $0x58] sm:$0xff] %v445
      %540 = vst [vmem:[%s172 + $0x60] sm:$0xff] %v450
      %541 = vst [vmem:[%s172 + $0x68] sm:$0xff] %v453
      %542 = vst [vmem:[%s172 + $0x70] sm:$0xff] %v458
      %543 = vst [vmem:[%s172 + $0x78] sm:$0xff] %v461
      %544 = vst [vmem:[%s172 + $0x80] sm:$0xff] %v466
      %545 = vst [vmem:[%s172 + $0x88] sm:$0xff] %v469
      %546 = vst [vmem:[%s172 + $0x90] sm:$0xff] %v474
      %547 = vst [vmem:[%s172 + $0x98] sm:$0xff] %v477
      %548 = vst [vmem:[%s172 + $0xa0] sm:$0xff] %v482
      %549 = vst [vmem:[%s172 + $0xa8] sm:$0xff] %v485
      %550 = vst [vmem:[%s172 + $0xb0] sm:$0xff] %v490
      %551 = vst [vmem:[%s172 + $0xb8] sm:$0xff] %v493
      %552 = vst [vmem:[%s172 + $0xc0] sm:$0xff] %v498
      %553 = vst [vmem:[%s172 + $0xc8] sm:$0xff] %v501
      %554 = vst [vmem:[%s172 + $0xd0] sm:$0xff] %v506
      %555 = vst [vmem:[%s172 + $0xd8] sm:$0xff] %v509
      %556 = vst [vmem:[%s172 + $0xe0] sm:$0xff] %v514
      %557 = vst [vmem:[%s172 + $0xe8] sm:$0xff] %v517
      %558 = vst [vmem:[%s172 + $0xf0] sm:$0xff] %v522
      %559 = vst [vmem:[%s172 + $0xf8] sm:$0xff] %v525
      %s560 = smul.u32 32, %s14
      %p561 = scmp.lt.s32.totalorder %s560, 63
      %s562 = scalar_select %p561, %s560, 63
      %s563 = smul.addr %s562, 8
      %s564 = scalar_lea.vmem %s3, %s563
      // Predicated region
      $region33: #{rowlstm_forward.2} parent=31 // pred_check
        %p565 = pneg %p100
      $region34: #{rowlstm_forward.2} parent=31 // pred_check_branch
        %567 = sbr.rel (%p565) target = $region36
      $region35: #{rowlstm_forward.2} parent=31 // pred_region
        %s568 = smul.u32 32, %s14
      $region36: #{rowlstm_forward.2} parent=31 // pred_fallthru
        _
    $region32: #{rowlstm_forward.2} parent=5 // pred_fallthru
      _
    %p569 = scmp.le.s32.totalorder 2, %s9
    // Predicated region
    $region37: #{rowlstm_forward.2} parent=5 // pred_check
      %p570 = pneg %p569
    $region38: #{rowlstm_forward.2} parent=5 // pred_check_branch
      %572 = sbr.rel (%p570) target = $region40
    $region39: #{rowlstm_forward.2} parent=5 // pred_region
      %s573 = ssub.s32 %s9, 2
      // Predicated region
      $region41: #{rowlstm_forward.2} parent=39 // pred_check
        %p574 = pneg %p106
      $region42: #{rowlstm_forward.2} parent=39 // pred_check_branch
        %576 = sbr.rel (%p574) target = $region44
      $region43: #{rowlstm_forward.2} parent=39 // pred_region
        %s577 = smul.u32 32, %s15
        %p578 = scmp.lt.s32.totalorder %s577, 63
        %s579 = scalar_select %p578, %s577, 63
        %s580 = smul.addr %s579, 8
        %s581 = scalar_lea.vmem %s3, %s580
      $region44: #{rowlstm_forward.2} parent=39 // pred_fallthru
        _
    $region40: #{rowlstm_forward.2} parent=5 // pred_fallthru
      _
  $region6: #{rowlstm_forward.2} parent=0 // loop_footer
    %s13 = sadd.s32 1, %s9
  $region7: #{rowlstm_forward.2} parent=0 // loop_footer_branch
    %8 = sbr.rel target = $region3
  $region8: #{rowlstm_forward.2} parent=0 // loop_exit
    _

// kernel: rowlstm_forward.3
$region0: #{rowlstm_forward.3}
  #allocation0 [shape = 'u32[]', space=smem, size = 0x4, offset = 0x4, fixed_abs, tag = 'smem constant byte address 0x4 - core index']
  #allocation1 [shape = 'u32[144,128]{1,0:T(1,128)}', space=vmem, size = 0x12000, scoped, tag = 'internal scratch']
  #allocation2 [shape = 'f32[32,32]{1,0:T(8,128)}', space=vmem, size = 0x4000, scoped, tag = 'scratch operand']
  #allocation3 [shape = 'f32[32,32]{1,0:T(8,128)}', space=vmem, size = 0x4000, scoped, tag = 'scratch operand']
  %s0 = inlined_call_operand.vmem [shape: f32[16,32,128], index: 0, kind: input, shape index: {}]
  %s1 = inlined_call_operand.vmem [shape: bf16[3,32,128], index: 1, kind: input, shape index: {}]
  %s2 = inlined_call_operand.vmem [shape: f32[2,32,128], index: 2, kind: input, shape index: {}]
  %s3 = inlined_call_operand.vmem [shape: f32[2,32,32], index: 3, kind: input, shape index: {}]
  %s4 = inlined_call_operand.vmem [shape: f32[16,32,32], index: 4, kind: output, shape index: {}]
  %s5 = sld [smem:[#allocation0]]
  $region53: #{rowlstm_forward.3} parent=0
    _
  %s7 = ssub.s32 1, %s5
  %s8 = scalar_select 0, %s7, %s5
  loop: start=0, step=1, limit=18
  $region2: #{rowlstm_forward.3} parent=0 // loop_pre_header
    _
  $region3: #{rowlstm_forward.3} parent=0 // loop_header
    %s10 = sphi 0, %s14
    %p11 = scmp.ge.s32.totalorder %s10, 18
    %s18 = sphi 0, %s18
    %s20 = sphi 0, %s18
    %s21 = sphi 0, %s20
    %s35 = sphi 0, %s21
    %s39 = sphi 0, %s39
    %s41 = sphi 0, %s39
    %s42 = sphi 0, %s41
    %s56 = sphi 0, %s42
    %s60 = sphi 0, %s60
    %s62 = sphi 0, %s60
    %s63 = sphi 0, %s62
    %s77 = sphi 0, %s63
    %s81 = sphi 0, %s81
    %s83 = sphi 0, %s81
    %s84 = sphi 0, %s83
    %s98 = sphi 0, %s84
    %s102 = sphi 0, %s102
    %s104 = sphi 0, %s102
    %s105 = sphi 0, %s104
    %s119 = sphi 0, %s105
  $region4: #{rowlstm_forward.3} parent=0 // loop_header_branch
    %13 = sbr.rel (%p11) target = $region8
  $region5: #{rowlstm_forward.3} parent=0 // loop_body
    %s15 = ssub.s32 %s10, 1
    %s16 = ssub.s32 %s10, 2
    %s17 = sadd.s32 %s10, 1
    %s19 = sadd.s32 %s18, 1
    %p22 = scmp.eq.s32.totalorder %s10, 15
    %p23 = scmp.ne.s32.totalorder %s18, %s20
    %p24 = scmp.eq.s32.totalorder %s10, 0
    %p25 = por %p23, %p24
    %p26 = scmp.ne.s32.totalorder %s18, %s20
    %p27 = scmp.eq.s32.totalorder %s15, 15
    %p28 = por %p26, %p27
    %p29 = scmp.ne.s32.totalorder %s20, %s21
    %p30 = scmp.eq.s32.totalorder %s15, 0
    %p31 = por %p29, %p30
    %p32 = scmp.ne.s32.totalorder %s20, %s21
    %p33 = scmp.eq.s32.totalorder %s16, 15
    %p34 = por %p32, %p33
    %p36 = scmp.ne.s32.totalorder %s21, %s35
    %p37 = scmp.eq.s32.totalorder %s16, 0
    %p38 = por %p36, %p37
    %s40 = sadd.s32 %s39, 1
    %p43 = scmp.eq.s32.totalorder %s10, 15
    %p44 = scmp.ne.s32.totalorder %s39, %s41
    %p45 = scmp.eq.s32.totalorder %s10, 0
    %p46 = por %p44, %p45
    %p47 = scmp.ne.s32.totalorder %s39, %s41
    %p48 = scmp.eq.s32.totalorder %s15, 15
    %p49 = por %p47, %p48
    %p50 = scmp.ne.s32.totalorder %s41, %s42
    %p51 = scmp.eq.s32.totalorder %s15, 0
    %p52 = por %p50, %p51
    %p53 = scmp.ne.s32.totalorder %s41, %s42
    %p54 = scmp.eq.s32.totalorder %s16, 15
    %p55 = por %p53, %p54
    %p57 = scmp.ne.s32.totalorder %s42, %s56
    %p58 = scmp.eq.s32.totalorder %s16, 0
    %p59 = por %p57, %p58
    %s61 = sadd.s32 %s60, 1
    %p64 = scmp.eq.s32.totalorder %s10, 15
    %p65 = scmp.ne.s32.totalorder %s60, %s62
    %p66 = scmp.eq.s32.totalorder %s10, 0
    %p67 = por %p65, %p66
    %p68 = scmp.ne.s32.totalorder %s60, %s62
    %p69 = scmp.eq.s32.totalorder %s15, 15
    %p70 = por %p68, %p69
    %p71 = scmp.ne.s32.totalorder %s62, %s63
    %p72 = scmp.eq.s32.totalorder %s15, 0
    %p73 = por %p71, %p72
    %p74 = scmp.ne.s32.totalorder %s62, %s63
    %p75 = scmp.eq.s32.totalorder %s16, 15
    %p76 = por %p74, %p75
    %p78 = scmp.ne.s32.totalorder %s63, %s77
    %p79 = scmp.eq.s32.totalorder %s16, 0
    %p80 = por %p78, %p79
    %s82 = sadd.s32 %s81, 1
    %p85 = scmp.eq.s32.totalorder %s10, 15
    %p86 = scmp.ne.s32.totalorder %s81, %s83
    %p87 = scmp.eq.s32.totalorder %s10, 0
    %p88 = por %p86, %p87
    %p89 = scmp.ne.s32.totalorder %s81, %s83
    %p90 = scmp.eq.s32.totalorder %s15, 15
    %p91 = por %p89, %p90
    %p92 = scmp.ne.s32.totalorder %s83, %s84
    %p93 = scmp.eq.s32.totalorder %s15, 0
    %p94 = por %p92, %p93
    %p95 = scmp.ne.s32.totalorder %s83, %s84
    %p96 = scmp.eq.s32.totalorder %s16, 15
    %p97 = por %p95, %p96
    %p99 = scmp.ne.s32.totalorder %s84, %s98
    %p100 = scmp.eq.s32.totalorder %s16, 0
    %p101 = por %p99, %p100
    %s103 = sadd.s32 %s102, 1
    %p106 = scmp.eq.s32.totalorder %s10, 15
    %p107 = scmp.ne.s32.totalorder %s102, %s104
    %p108 = scmp.eq.s32.totalorder %s10, 0
    %p109 = por %p107, %p108
    %p110 = scmp.ne.s32.totalorder %s102, %s104
    %p111 = scmp.eq.s32.totalorder %s15, 15
    %p112 = por %p110, %p111
    %p113 = scmp.ne.s32.totalorder %s104, %s105
    %p114 = scmp.eq.s32.totalorder %s15, 0
    %p115 = por %p113, %p114
    %p116 = scmp.ne.s32.totalorder %s104, %s105
    %p117 = scmp.eq.s32.totalorder %s16, 15
    %p118 = por %p116, %p117
    %p120 = scmp.ne.s32.totalorder %s105, %s119
    %p121 = scmp.eq.s32.totalorder %s16, 0
    %p122 = por %p120, %p121
    %p123 = scmp.le.s32.totalorder 1, %s10
    %p124 = scmp.lt.s32.totalorder %s10, 17
    %p125 = pnand %p123, %p124
    %p126 = pneg %p125
    // Predicated region
    $region9: #{rowlstm_forward.3} parent=5 // pred_check
      _
    $region10: #{rowlstm_forward.3} parent=5 // pred_check_branch
      %128 = sbr.rel (%p125) target = $region12
    $region11: #{rowlstm_forward.3} parent=5 // pred_region
      %s129 = ssub.s32 %s10, 1
      // Predicated region
      $region13: #{rowlstm_forward.3} parent=11 // pred_check
        %p130 = pneg %p31
      $region14: #{rowlstm_forward.3} parent=11 // pred_check_branch
        %132 = sbr.rel (%p130) target = $region16
      $region15: #{rowlstm_forward.3} parent=11 // pred_region
        _
      $region16: #{rowlstm_forward.3} parent=11 // pred_fallthru
        _
      // Predicated region
      $region17: #{rowlstm_forward.3} parent=11 // pred_check
        %p133 = pneg %p52
      $region18: #{rowlstm_forward.3} parent=11 // pred_check_branch
        %135 = sbr.rel (%p133) target = $region20
      $region19: #{rowlstm_forward.3} parent=11 // pred_region
        _
      $region20: #{rowlstm_forward.3} parent=11 // pred_fallthru
        _
      // Predicated region
      $region21: #{rowlstm_forward.3} parent=11 // pred_check
        %p136 = pneg %p73
      $region22: #{rowlstm_forward.3} parent=11 // pred_check_branch
        %138 = sbr.rel (%p136) target = $region24
      $region23: #{rowlstm_forward.3} parent=11 // pred_region
        _
      $region24: #{rowlstm_forward.3} parent=11 // pred_fallthru
        _
      // Predicated region
      $region25: #{rowlstm_forward.3} parent=11 // pred_check
        %p139 = pneg %p94
      $region26: #{rowlstm_forward.3} parent=11 // pred_check_branch
        %141 = sbr.rel (%p139) target = $region28
      $region27: #{rowlstm_forward.3} parent=11 // pred_region
        _
      $region28: #{rowlstm_forward.3} parent=11 // pred_fallthru
        _
    $region12: #{rowlstm_forward.3} parent=5 // pred_fallthru
      _
    %p142 = scmp.lt.s32.totalorder %s10, 16
    // Predicated region
    $region29: #{rowlstm_forward.3} parent=5 // pred_check
      %p143 = pneg %p142
    $region30: #{rowlstm_forward.3} parent=5 // pred_check_branch
      %145 = sbr.rel (%p143) target = $region32
    $region31: #{rowlstm_forward.3} parent=5 // pred_region
      _
    $region32: #{rowlstm_forward.3} parent=5 // pred_fallthru
      _
    %p146 = scmp.le.s32.totalorder 1, %s10
    %p147 = scmp.lt.s32.totalorder %s10, 17
    %p148 = pnand %p146, %p147
    %p149 = pneg %p148
    // Predicated region
    $region33: #{rowlstm_forward.3} parent=5 // pred_check
      _
    $region34: #{rowlstm_forward.3} parent=5 // pred_check_branch
      %151 = sbr.rel (%p148) target = $region36
    $region35: #{rowlstm_forward.3} parent=5 // pred_region
      %s152 = ssub.s32 %s10, 1
      %p153 = pneg %p31
      %p154 = pneg %p28
      %p155 = pneg %p52
      %p156 = pneg %p49
      %p157 = pneg %p73
      %p158 = pneg %p70
      %p159 = pneg %p94
      %p160 = pneg %p91
      %p161 = pneg %p115
      %p162 = pneg %p112
      %p164 = scmp.eq.s32.totalorder %s15, 0
      // Predicated region
      $region37: #{rowlstm_forward.3} parent=35 // pred_check
        %p165 = pneg %p164
      $region38: #{rowlstm_forward.3} parent=35 // pred_check_branch
        %167 = sbr.rel (%p165) target = $region40
      $region39: #{rowlstm_forward.3} parent=35 // pred_region
        %vm168 = vcmask 261120
        %169 = vst.msk [vmem:[#allocation2] sm:$0xff] %vm168, 0.0
        %170 = vst.msk [vmem:[#allocation2 + $0x8] sm:$0xff] %vm168, 0.0
        %171 = vst.msk [vmem:[#allocation2 + $0x10] sm:$0xff] %vm168, 0.0
        %172 = vst.msk [vmem:[#allocation2 + $0x18] sm:$0xff] %vm168, 0.0
        %173 = vst.msk [vmem:[#allocation3] sm:$0xff] %vm168, 0.0
        %174 = vst.msk [vmem:[#allocation3 + $0x8] sm:$0xff] %vm168, 0.0
        %175 = vst.msk [vmem:[#allocation3 + $0x10] sm:$0xff] %vm168, 0.0
        %176 = vst.msk [vmem:[#allocation3 + $0x18] sm:$0xff] %vm168, 0.0
      $region40: #{rowlstm_forward.3} parent=35 // pred_fallthru
        _
      %v177 = vld [vmem:[#allocation2] sm:$0xff]
      %v178 = vld [vmem:[#allocation2 + $0x8] sm:$0xff]
      %v179 = vld [vmem:[#allocation2 + $0x10] sm:$0xff]
      %v180 = vld [vmem:[#allocation2 + $0x18] sm:$0xff]
      %v181 = vld [vmem:[#allocation3] sm:$0xff]
      %v182 = vld [vmem:[#allocation3 + $0x8] sm:$0xff]
      %v183 = vld [vmem:[#allocation3 + $0x10] sm:$0xff]
      %v184 = vld [vmem:[#allocation3 + $0x18] sm:$0xff]
      %v185 = vrot.slane %v177, 7
      %v186 = vrot.slane %v178, 7
      %v187 = vrot.slane %v179, 7
      %v188 = vrot.slane %v180, 7
      %v189 = vlaneseq
      %v190 = vshrl.u32 %v189, 7
      %vm191 = vcmp.lt.s32.totalorder %v190, 1
      %v192 = vsel %vm191, %v187, %v188
      %v193 = vsel %vm191, %v186, %v187
      %v194 = vsel %vm191, %v185, %v186
      %v195 = vsel %vm191, %v188, %v185
      %v196 = vld [vmem:[%s3] sm:$0xff]
      %v197 = vld [vmem:[%s3 + $0x8] sm:$0xff]
      %v198 = vld [vmem:[%s3 + $0x10] sm:$0xff]
      %v199 = vld [vmem:[%s3 + $0x18] sm:$0xff]
      %v200 = vmul.f32 %v195, %v196
      %v201 = vmul.f32 %v194, %v197
      %v202 = vmul.f32 %v193, %v198
      %v203 = vmul.f32 %v192, %v199
      %v204 = vrot.slane %v177, 1
      %v205 = vrot.slane %v178, 1
      %v206 = vrot.slane %v179, 1
      %v207 = vrot.slane %v180, 1
      %vm208 = vcmp.lt.s32.totalorder %v190, 7
      %v209 = vsel %vm208, %v206, %v207
      %v210 = vsel %vm208, %v205, %v206
      %v211 = vsel %vm208, %v204, %v205
      %v212 = vsel %vm208, %v207, %v204
      %s213 = scalar_lea.vmem %s3, 32
      %v214 = vld [vmem:[%s213] sm:$0xff]
      %v215 = vld [vmem:[%s213 + $0x8] sm:$0xff]
      %v216 = vld [vmem:[%s213 + $0x10] sm:$0xff]
      %v217 = vld [vmem:[%s213 + $0x18] sm:$0xff]
      %v218 = vmul.f32 %v211, %v214
      %v219 = vmul.f32 %v210, %v215
      %v220 = vmul.f32 %v209, %v216
      %v221 = vmul.f32 %v212, %v217
      %s222 = smul.u32 %s15, 32
      %s223 = scalar_lea.vmem %s0, %s222
      %v224 = vld [vmem:[%s223] sm:$0xff]
      %v225 = vld [vmem:[%s223 + $0x8] sm:$0xff]
      %v226 = vld [vmem:[%s223 + $0x10] sm:$0xff]
      %v227 = vld [vmem:[%s223 + $0x18] sm:$0xff]
      %v228 = vpack.c.bf16 %v201, %v200
      %v229 = vpack.c.bf16 %v203, %v202
      %v230 = vld [vmem:[%s1] sm:$0xf]
      %v231 = vld [vmem:[%s1 + $0x4] sm:$0xf]
      %v232 = vld [vmem:[%s1 + $0x8] sm:$0xf]
      %v233 = vld [vmem:[%s1 + $0xc] sm:$0xf]
      %v238 = vunpack.c.l.b16 %v230
      %v239 = vunpack.c.l.b16 %v231
      %v240 = vunpack.c.l.b16 %v232
      %v241 = vunpack.c.l.b16 %v233
      %v242 = vpack.c.b16 %v239, %v238
      %v243 = vpack.c.b16 %v241, %v240
      %vm246 = vcmask 261120
      %v248 = vsel %vm246, %v228, 0
      %v251 = vsel %vm246, %v229, 0
      %253 = vmatprep.subr.bf16.mxu0 0
      %254 = vmatpush1.bf16.msra.mxu0 %v242
      %255 = vmatprep.subr.bf16.mxu0 0
      %256 = vmatpush1.bf16.msra.mxu0 %v243
      %257 = vmatprep.subr.bf16.mxu0 0
      %258 = vmatpush1.bf16.msra.mxu0 0
      %259 = vmatprep.subr.bf16.mxu0 0
      %260 = vmatpush1.bf16.msra.mxu0 0
      %261 = vmatprep.subr.bf16.mxu0 0
      %262 = vmatpush1.bf16.msra.mxu0 0
      %263 = vmatprep.subr.bf16.mxu0 0
      %264 = vmatpush1.bf16.msra.mxu0 0
      %265 = vmatprep.subr.bf16.mxu0 0
      %266 = vmatpush1.bf16.msra.mxu0 0
      %267 = vmatprep.subr.bf16.mxu0 0
      %268 = vmatpush1.bf16.msra.mxu0 0
      %269 = vmatprep.subr.bf16.mxu0 0
      %270 = vmatpush1.bf16.msra.mxu0 0
      %271 = vmatprep.subr.bf16.mxu0 0
      %272 = vmatpush1.bf16.msra.mxu0 0
      %273 = vmatprep.subr.bf16.mxu0 0
      %274 = vmatpush1.bf16.msra.mxu0 0
      %275 = vmatprep.subr.bf16.mxu0 0
      %276 = vmatpush1.bf16.msra.mxu0 0
      %277 = vmatprep.subr.bf16.mxu0 0
      %278 = vmatpush1.bf16.msra.mxu0 0
      %279 = vmatprep.subr.bf16.mxu0 0
      %280 = vmatpush1.bf16.msra.mxu0 0
      %281 = vmatprep.subr.bf16.mxu0 0
      %282 = vmatpush1.bf16.msra.mxu0 0
      %283 = vmatprep.subr.bf16.mxu0 0
      %284 = vmatpush1.bf16.msra.mxu0 0
      %285 = vmatprep.mubr.bf16.mxu0 0
      %286 = vmatmul.mubr.bf16.gmra.mrb[0].mxu0 %v248
      %v287 = vpop.f32.mrb[0].mxu0
      %v288 = vadd.f32 0.0, %v287
      %v289 = vpop.f32.mrb[0].mxu0
      %v290 = vpop.f32.mrb[0].mxu0
      %v291 = vadd.f32 0.0, %v290
      %v292 = vpop.f32.mrb[0].mxu0
      %293 = vmatprep.mubr.bf16.mxu0 0
      %294 = vmatmul.mubr.bf16.gmra.mrb[0].mxu0 %v251
      %v295 = vpop.f32.mrb[0].mxu0
      %v296 = vadd.f32 0.0, %v295
      %v297 = vpop.f32.mrb[0].mxu0
      %v298 = vpop.f32.mrb[0].mxu0
      %v299 = vadd.f32 0.0, %v298
      %v300 = vpop.f32.mrb[0].mxu0
      %301 = vdwg.mxu0
      %v302 = vadd.f32 %v224, %v288
      %v303 = vadd.f32 %v225, %v291
      %v304 = vadd.f32 %v226, %v296
      %v305 = vadd.f32 %v227, %v299
      %v306 = vpack.c.bf16 %v178, %v177
      %v307 = vpack.c.bf16 %v180, %v179
      %s308 = scalar_lea.vmem %s1, 16
      %v309 = vld [vmem:[%s308] sm:$0xf]
      %v310 = vld [vmem:[%s308 + $0x4] sm:$0xf]
      %v311 = vld [vmem:[%s308 + $0x8] sm:$0xf]
      %v312 = vld [vmem:[%s308 + $0xc] sm:$0xf]
      %v317 = vunpack.c.l.b16 %v309
      %v318 = vunpack.c.l.b16 %v310
      %v319 = vunpack.c.l.b16 %v311
      %v320 = vunpack.c.l.b16 %v312
      %v321 = vpack.c.b16 %v318, %v317
      %v322 = vpack.c.b16 %v320, %v319
      %v326 = vsel %vm246, %v306, 0
      %v329 = vsel %vm246, %v307, 0
      %331 = vmatprep.subr.bf16.mxu0 0
      %332 = vmatpush1.bf16.msra.mxu0 %v321
      %333 = vmatprep.subr.bf16.mxu0 0
      %334 = vmatpush1.bf16.msra.mxu0 %v322
      %335 = vmatprep.subr.bf16.mxu0 0
      %336 = vmatpush1.bf16.msra.mxu0 0
      %337 = vmatprep.subr.bf16.mxu0 0
      %338 = vmatpush1.bf16.msra.mxu0 0
      %339 = vmatprep.subr.bf16.mxu0 0
      %340 = vmatpush1.bf16.msra.mxu0 0
      %341 = vmatprep.subr.bf16.mxu0 0
      %342 = vmatpush1.bf16.msra.mxu0 0
      %343 = vmatprep.subr.bf16.mxu0 0
      %344 = vmatpush1.bf16.msra.mxu0 0
      %345 = vmatprep.subr.bf16.mxu0 0
      %346 = vmatpush1.bf16.msra.mxu0 0
      %347 = vmatprep.subr.bf16.mxu0 0
      %348 = vmatpush1.bf16.msra.mxu0 0
      %349 = vmatprep.subr.bf16.mxu0 0
      %350 = vmatpush1.bf16.msra.mxu0 0
      %351 = vmatprep.subr.bf16.mxu0 0
      %352 = vmatpush1.bf16.msra.mxu0 0
      %353 = vmatprep.subr.bf16.mxu0 0
      %354 = vmatpush1.bf16.msra.mxu0 0
      %355 = vmatprep.subr.bf16.mxu0 0
      %356 = vmatpush1.bf16.msra.mxu0 0
      %357 = vmatprep.subr.bf16.mxu0 0
      %358 = vmatpush1.bf16.msra.mxu0 0
      %359 = vmatprep.subr.bf16.mxu0 0
      %360 = vmatpush1.bf16.msra.mxu0 0
      %361 = vmatprep.subr.bf16.mxu0 0
      %362 = vmatpush1.bf16.msra.mxu0 0
      %363 = vmatprep.mubr.bf16.mxu0 0
      %364 = vmatmul.mubr.bf16.gmra.mrb[0].mxu0 %v326
      %v365 = vpop.f32.mrb[0].mxu0
      %v366 = vadd.f32 0.0, %v365
      %v367 = vpop.f32.mrb[0].mxu0
      %v368 = vpop.f32.mrb[0].mxu0
      %v369 = vadd.f32 0.0, %v368
      %v370 = vpop.f32.mrb[0].mxu0
      %371 = vmatprep.mubr.bf16.mxu0 0
      %372 = vmatmul.mubr.bf16.gmra.mrb[0].mxu0 %v329
      %v373 = vpop.f32.mrb[0].mxu0
      %v374 = vadd.f32 0.0, %v373
      %v375 = vpop.f32.mrb[0].mxu0
      %v376 = vpop.f32.mrb[0].mxu0
      %v377 = vadd.f32 0.0, %v376
      %v378 = vpop.f32.mrb[0].mxu0
      %379 = vdwg.mxu0
      %v380 = vadd.f32 %v302, %v366
      %v381 = vadd.f32 %v303, %v369
      %v382 = vadd.f32 %v304, %v374
      %v383 = vadd.f32 %v305, %v377
      %v384 = vpack.c.bf16 %v219, %v218
      %v385 = vpack.c.bf16 %v221, %v220
      %s386 = scalar_lea.vmem %s1, 32
      %v387 = vld [vmem:[%s386] sm:$0xf]
      %v388 = vld [vmem:[%s386 + $0x4] sm:$0xf]
      %v389 = vld [vmem:[%s386 + $0x8] sm:$0xf]
      %v390 = vld [vmem:[%s386 + $0xc] sm:$0xf]
      %v395 = vunpack.c.l.b16 %v387
      %v396 = vunpack.c.l.b16 %v388
      %v397 = vunpack.c.l.b16 %v389
      %v398 = vunpack.c.l.b16 %v390
      %v399 = vpack.c.b16 %v396, %v395
      %v400 = vpack.c.b16 %v398, %v397
      %v404 = vsel %vm246, %v384, 0
      %v407 = vsel %vm246, %v385, 0
      %409 = vmatprep.subr.bf16.mxu0 0
      %410 = vmatpush1.bf16.msra.mxu0 %v399
      %411 = vmatprep.subr.bf16.mxu0 0
      %412 = vmatpush1.bf16.msra.mxu0 %v400
      %413 = vmatprep.subr.bf16.mxu0 0
      %414 = vmatpush1.bf16.msra.mxu0 0
      %415 = vmatprep.subr.bf16.mxu0 0
      %416 = vmatpush1.bf16.msra.mxu0 0
      %417 = vmatprep.subr.bf16.mxu0 0
      %418 = vmatpush1.bf16.msra.mxu0 0
      %419 = vmatprep.subr.bf16.mxu0 0
      %420 = vmatpush1.bf16.msra.mxu0 0
      %421 = vmatprep.subr.bf16.mxu0 0
      %422 = vmatpush1.bf16.msra.mxu0 0
      %423 = vmatprep.subr.bf16.mxu0 0
      %424 = vmatpush1.bf16.msra.mxu0 0
      %425 = vmatprep.subr.bf16.mxu0 0
      %426 = vmatpush1.bf16.msra.mxu0 0
      %427 = vmatprep.subr.bf16.mxu0 0
      %428 = vmatpush1.bf16.msra.mxu0 0
      %429 = vmatprep.subr.bf16.mxu0 0
      %430 = vmatpush1.bf16.msra.mxu0 0
      %431 = vmatprep.subr.bf16.mxu0 0
      %432 = vmatpush1.bf16.msra.mxu0 0
      %433 = vmatprep.subr.bf16.mxu0 0
      %434 = vmatpush1.bf16.msra.mxu0 0
      %435 = vmatprep.subr.bf16.mxu0 0
      %436 = vmatpush1.bf16.msra.mxu0 0
      %437 = vmatprep.subr.bf16.mxu0 0
      %438 = vmatpush1.bf16.msra.mxu0 0
      %439 = vmatprep.subr.bf16.mxu0 0
      %440 = vmatpush1.bf16.msra.mxu0 0
      %441 = vmatprep.mubr.bf16.mxu0 0
      %442 = vmatmul.mubr.bf16.gmra.mrb[0].mxu0 %v404
      %v443 = vpop.f32.mrb[0].mxu0
      %v444 = vadd.f32 0.0, %v443
      %v445 = vpop.f32.mrb[0].mxu0
      %v446 = vpop.f32.mrb[0].mxu0
      %v447 = vadd.f32 0.0, %v446
      %v448 = vpop.f32.mrb[0].mxu0
      %449 = vmatprep.mubr.bf16.mxu0 0
      %450 = vmatmul.mubr.bf16.gmra.mrb[0].mxu0 %v407
      %v451 = vpop.f32.mrb[0].mxu0
      %v452 = vadd.f32 0.0, %v451
      %v453 = vpop.f32.mrb[0].mxu0
      %v454 = vpop.f32.mrb[0].mxu0
      %v455 = vadd.f32 0.0, %v454
      %v456 = vpop.f32.mrb[0].mxu0
      %457 = vdwg.mxu0
      %v458 = vadd.f32 %v380, %v444
      %v459 = vadd.f32 %v381, %v447
      %v460 = vadd.f32 %v382, %v452
      %v461 = vadd.f32 %v383, %v455
      %v462 = vtanh.pop %v458
      %v463 = vtanh.pop %v459
      %v464 = vtanh.pop %v460
      %v465 = vtanh.pop %v461
      %v466 = vld [vmem:[%s2] sm:$0xff]
      %v467 = vld [vmem:[%s2 + $0x8] sm:$0xff]
      %v468 = vld [vmem:[%s2 + $0x10] sm:$0xff]
      %v469 = vld [vmem:[%s2 + $0x18] sm:$0xff]
      %v470 = vmul.f32 %v462, %v466
      %v471 = vmul.f32 %v463, %v467
      %v472 = vmul.f32 %v464, %v468
      %v473 = vmul.f32 %v465, %v469
      %s474 = scalar_lea.vmem %s2, 32
      %v475 = vld [vmem:[%s474] sm:$0xff]
      %v476 = vld [vmem:[%s474 + $0x8] sm:$0xff]
      %v477 = vld [vmem:[%s474 + $0x10] sm:$0xff]
      %v478 = vld [vmem:[%s474 + $0x18] sm:$0xff]
      %v479 = vadd.f32 %v470, %v475
      %v480 = vadd.f32 %v471, %v476
      %v481 = vadd.f32 %v472, %v477
      %v482 = vadd.f32 %v473, %v478
      %487 = vrot.lane.b32.xlu0 %v181, 32
      %v488 = vpop.permute.xlu0 %487
      %489 = vrot.lane.b32.xlu0 %v182, 32
      %v490 = vpop.permute.xlu0 %489
      %491 = vrot.lane.b32.xlu0 %v183, 32
      %v492 = vpop.permute.xlu0 %491
      %493 = vrot.lane.b32.xlu0 %v184, 32
      %v494 = vpop.permute.xlu0 %493
      %v499 = vmul.f32 %v479, %v488
      %v500 = vmul.f32 %v480, %v490
      %v501 = vmul.f32 %v481, %v492
      %v502 = vmul.f32 %v482, %v494
      %507 = vrot.lane.b32.xlu0 %v479, 64
      %v508 = vpop.permute.xlu0 %507
      %509 = vrot.lane.b32.xlu0 %v480, 64
      %v510 = vpop.permute.xlu0 %509
      %511 = vrot.lane.b32.xlu0 %v481, 64
      %v512 = vpop.permute.xlu0 %511
      %513 = vrot.lane.b32.xlu0 %v482, 64
      %v514 = vpop.permute.xlu0 %513
      %v519 = vmul.f32 %v479, %v508
      %v520 = vmul.f32 %v480, %v510
      %v521 = vmul.f32 %v481, %v512
      %v522 = vmul.f32 %v482, %v514
      %527 = vrot.lane.b32.xlu0 %v519, 32
      %v528 = vpop.permute.xlu0 %527
      %529 = vrot.lane.b32.xlu0 %v520, 32
      %v530 = vpop.permute.xlu0 %529
      %531 = vrot.lane.b32.xlu0 %v521, 32
      %v532 = vpop.permute.xlu0 %531
      %533 = vrot.lane.b32.xlu0 %v522, 32
      %v534 = vpop.permute.xlu0 %533
      %v539 = vadd.f32 %v499, %v528
      %v540 = vadd.f32 %v500, %v530
      %v541 = vadd.f32 %v501, %v532
      %v542 = vadd.f32 %v502, %v534
      %v543 = vtanh.pop %v539
      %v544 = vtanh.pop %v540
      %v545 = vtanh.pop %v541
      %v546 = vtanh.pop %v542
      %551 = vrot.lane.b32.xlu0 %v543, 64
      %v552 = vpop.permute.xlu0 %551
      %553 = vrot.lane.b32.xlu0 %v544, 64
      %v554 = vpop.permute.xlu0 %553
      %555 = vrot.lane.b32.xlu0 %v545, 64
      %v556 = vpop.permute.xlu0 %555
      %557 = vrot.lane.b32.xlu0 %v546, 64
      %v558 = vpop.permute.xlu0 %557
      %v563 = vmul.f32 %v479, %v552
      %v564 = vmul.f32 %v480, %v554
      %v565 = vmul.f32 %v481, %v556
      %v566 = vmul.f32 %v482, %v558
      %571 = vrot.lane.b32.xlu0 %v563, 32
      %v572 = vpop.permute.xlu0 %571
      %573 = vrot.lane.b32.xlu0 %v564, 32
      %v574 = vpop.permute.xlu0 %573
      %575 = vrot.lane.b32.xlu0 %v565, 32
      %v576 = vpop.permute.xlu0 %575
      %577 = vrot.lane.b32.xlu0 %v566, 32
      %v578 = vpop.permute.xlu0 %577
      %583 = vst.msk [vmem:[#allocation2] sm:$0xff] %vm246, %v572
      %584 = vst.msk [vmem:[#allocation2 + $0x8] sm:$0xff] %vm246, %v574
      %585 = vst.msk [vmem:[#allocation2 + $0x10] sm:$0xff] %vm246, %v576
      %586 = vst.msk [vmem:[#allocation2 + $0x18] sm:$0xff] %vm246, %v578
      %591 = vrot.lane.b32.xlu0 %v539, 96
      %v592 = vpop.permute.xlu0 %591
      %593 = vrot.lane.b32.xlu0 %v540, 96
      %v594 = vpop.permute.xlu0 %593
      %595 = vrot.lane.b32.xlu0 %v541, 96
      %v596 = vpop.permute.xlu0 %595
      %597 = vrot.lane.b32.xlu0 %v542, 96
      %v598 = vpop.permute.xlu0 %597
      %603 = vst.msk [vmem:[#allocation3] sm:$0xff] %vm246, %v592
      %604 = vst.msk [vmem:[#allocation3 + $0x8] sm:$0xff] %vm246, %v594
      %605 = vst.msk [vmem:[#allocation3 + $0x10] sm:$0xff] %vm246, %v596
      %606 = vst.msk [vmem:[#allocation3 + $0x18] sm:$0xff] %vm246, %v598
      %s607 = scalar_lea.vmem %s4, %s222
      %608 = vst.msk [vmem:[%s607] sm:$0xff] %vm246, %v572
      %609 = vst.msk [vmem:[%s607 + $0x8] sm:$0xff] %vm246, %v574
      %610 = vst.msk [vmem:[%s607 + $0x10] sm:$0xff] %vm246, %v576
      %611 = vst.msk [vmem:[%s607 + $0x18] sm:$0xff] %vm246, %v578
      // Predicated region
      $region41: #{rowlstm_forward.3} parent=35 // pred_check
        %p612 = pneg %p112
      $region42: #{rowlstm_forward.3} parent=35 // pred_check_branch
        %614 = sbr.rel (%p612) target = $region44
      $region43: #{rowlstm_forward.3} parent=35 // pred_region
        _
      $region44: #{rowlstm_forward.3} parent=35 // pred_fallthru
        _
      // Predicated region
      $region45: #{rowlstm_forward.3} parent=35 // pred_check
        %p615 = pneg %p112
      $region46: #{rowlstm_forward.3} parent=35 // pred_check_branch
        %617 = sbr.rel (%p615) target = $region48
      $region47: #{rowlstm_forward.3} parent=35 // pred_region
        _
      $region48: #{rowlstm_forward.3} parent=35 // pred_fallthru
        _
    $region36: #{rowlstm_forward.3} parent=5 // pred_fallthru
      _
    %p618 = scmp.le.s32.totalorder 2, %s10
    // Predicated region
    $region49: #{rowlstm_forward.3} parent=5 // pred_check
      %p619 = pneg %p618
    $region50: #{rowlstm_forward.3} parent=5 // pred_check_branch
      %621 = sbr.rel (%p619) target = $region52
    $region51: #{rowlstm_forward.3} parent=5 // pred_region
      %s622 = ssub.s32 %s10, 2
    $region52: #{rowlstm_forward.3} parent=5 // pred_fallthru
      _
  $region6: #{rowlstm_forward.3} parent=0 // loop_footer
    %s14 = sadd.s32 1, %s10
  $region7: #{rowlstm_forward.3} parent=0 // loop_footer_branch
    %9 = sbr.rel target = $region3
  $region8: #{rowlstm_forward.3} parent=0 // loop_exit
    _

</llo_original>
